<compile_context>
chip_gen: v6e
topology: v6e:2x2x1
jax: 0.10.0
libtpu: 0.0.40
codegen_flags: <defaults>
</compile_context>

<pallas_src>
import math
import functools

import jax
import jax.numpy as jnp
import numpy as np
from jax.experimental import pallas as pl
from jax.experimental.pallas import tpu as pltpu


def _ceil_to(x, m):
    return ((x + m - 1) // m) * m


def _chip_vmem_capacity():
    try:
        return int(pltpu.get_tpu_info().vmem_capacity_bytes)
    except Exception:
        return 64 * 1024 * 1024  # conservative (v7x-class) fallback


def prepare_mhca_params(Wq, Wk, Wv, Wo, *, compute_dtype=jnp.bfloat16):
    """PyTorch nn.Linear stores weights as (out, in); the wrapper/kernel want
    (in, out).  Transpose + cast once, outside the per-call hot path.  Wk/Wv
    are fused into one (D, 2D) matrix so K and V come from a single matmul."""
    Wq, Wk, Wv, Wo = (jnp.asarray(W) for W in (Wq, Wk, Wv, Wo))
    wq_t = Wq.T.astype(compute_dtype)
    wkv_t = jnp.concatenate([Wk.T, Wv.T], axis=1).astype(compute_dtype)
    wo_t = Wo.T.astype(compute_dtype)
    return wq_t, wkv_t, wo_t


def _mhca_attn_kernel(qh_ref, kh_ref, vh_ref, kvb_ref, qm_ref, wo_ref,
                      out_ref, m_sc, l_sc, acc_sc, *, approx_recip):
    """Flash-style cross attention over pre-projected, head-major Q/K/V.

    qh_ref: (H, TQ, hd) pre-scaled Q heads (resident across the kv axis)
    kh_ref, vh_ref: (H, TK, hd) K/V heads for this kv tile
    kvb_ref: (1, 1, TK) additive bias (0 keep / -1e9 masked / -3e9 padding)
    qm_ref:  (1, TQ, 1) q mask (1.0 -> zero the output row)
    wo_ref:  (D, D) output projection (used only in the finalize)
    """
    H, TQ, hd = qh_ref.shape
    cdt = qh_ref.dtype
    ki = pl.program_id(2)
    nk = pl.num_programs(2)

    @pl.when(ki == 0)
    def _init():
        m_sc[...] = jnp.full((H, TQ, 1), -jnp.inf, jnp.float32)
        l_sc[...] = jnp.zeros((H, TQ, 1), jnp.float32)
        acc_sc[...] = jnp.zeros((H, TQ, hd), jnp.float32)

    q = qh_ref[...]                                   # (H, TQ, hd), pre-scaled
    k = kh_ref[...]                                   # (H, TK, hd)
    v = vh_ref[...]                                   # (H, TK, hd)

    # Scaled logits for this kv tile, f32: (H, TQ, TK).
    s = jnp.einsum('hqe,hke->hqk', q, k, preferred_element_type=jnp.float32)
    # Additive kv bias: 0 keep, -1e9 masked (== masked_fill), -3e9 padding.
    s = s + kvb_ref[...]

    # Online-softmax update with f32 VMEM accumulators.
    m_prev = m_sc[...]
    m_new = jnp.maximum(m_prev, jnp.max(s, axis=-1, keepdims=True))
    alpha = jnp.exp(m_prev - m_new)
    p = jnp.exp(s - m_new)                            # (H, TQ, TK), f32
    l_sc[...] = alpha * l_sc[...] + jnp.sum(p, axis=-1, keepdims=True)
    acc_sc[...] = alpha * acc_sc[...] + jnp.einsum(
        'hqk,hke->hqe', p.astype(cdt), v, preferred_element_type=jnp.float32)
    m_sc[...] = m_new

    @pl.when(ki == nk - 1)
    def _finalize():
        if approx_recip:
            inv_l = pl.reciprocal(l_sc[...], approx=True)   # EUP slot
        else:
            inv_l = 1.0 / l_sc[...]
        o = (acc_sc[...] * inv_l).astype(cdt)               # (H, TQ, hd)
        o = o.transpose(1, 0, 2).reshape(TQ, H * hd)        # merge heads (once)
        out = jnp.dot(o, wo_ref[...], preferred_element_type=jnp.float32)
        out = jnp.where(qm_ref[0] > 0.5, 0.0, out)          # zero masked q rows
        out_ref[0] = out.astype(out_ref.dtype)


def multi_head_cross_attention(Qx, Mx, params, q_mask=None, kv_mask=None, *,
                               num_heads, block_q=None, block_kv=None):
    """Qx: (B, LQ, D), Mx: (B, LM, D); params from prepare_mhca_params.
    q_mask: (B, LQ) bool, kv_mask: (B, LM) bool.  Returns (B, LQ, D)."""
    wq_t, wkv_t, wo_t = params
    cdt = wq_t.dtype
    B, LQ, D = Qx.shape
    LM = Mx.shape[1]
    assert D % num_heads == 0, "d_model must be divisible by num_heads"
    H = num_heads
    hd = D // H
    scale = 1.0 / math.sqrt(hd)
    out_dtype = Qx.dtype

    # ---- chip-aware tile sizes ------------------------------------------------
    vmem_cap = _chip_vmem_capacity()
    small_vmem = vmem_cap <= (96 << 20)       # v7x-class: 64 MiB per TensorCore
    if block_q is None:
        block_q = 256
    if block_kv is None:
        block_kv = 256 if small_vmem else 512
    # 256-granular tiles fill the 256-wide MXU on v6e/v7x, stay 128-aligned for
    # v5e.  (For v7x megacore, ensure B * num-q-tiles >= 2 so both cores work.)
    block_q = max(256, _ceil_to(block_q, 256))
    block_kv = max(256, _ceil_to(block_kv, 256))

    if LQ <= block_q:
        TQ = _ceil_to(LQ, 8); LQp = TQ
    else:
        TQ = block_q; LQp = _ceil_to(LQ, TQ)
    if LM <= block_kv:
        TK = _ceil_to(LM, 8); LMp = TK
    else:
        TK = block_kv; LMp = _ceil_to(LM, TK)

    # ---- hoisted projections + head split (once per call, plain XLA) ---------
    qx = Qx.astype(cdt)
    mx = Mx.astype(cdt)
    if LQp != LQ:
        qx = jnp.pad(qx, ((0, 0), (0, LQp - LQ), (0, 0)))
    if LMp != LM:
        mx = jnp.pad(mx, ((0, 0), (0, LMp - LM), (0, 0)))

    q = jnp.einsum('bld,de->ble', qx, wq_t,
                   preferred_element_type=jnp.float32) * scale
    qh = q.reshape(B, LQp, H, hd).transpose(0, 2, 1, 3) \
          .reshape(B * H, LQp, hd).astype(cdt)
    kv = jnp.einsum('bld,de->ble', mx, wkv_t,
                    preferred_element_type=jnp.float32)
    kh = kv[..., :D].reshape(B, LMp, H, hd).transpose(0, 2, 1, 3) \
                    .reshape(B * H, LMp, hd).astype(cdt)
    vh = kv[..., D:].reshape(B, LMp, H, hd).transpose(0, 2, 1, 3) \
                    .reshape(B * H, LMp, hd).astype(cdt)

    # kv additive bias: 0 keep, -1e9 masked (== masked_fill), -3e9 padding.
    if kv_mask is None:
        kvb = jnp.zeros((B, LM), jnp.float32)
    else:
        kvb = jnp.where(kv_mask, -1e9, 0.0).astype(jnp.float32)
    if LMp != LM:
        kvb = jnp.pad(kvb, ((0, 0), (0, LMp - LM)), constant_values=-3e9)
    kvb = kvb.reshape(B, 1, LMp)

    if q_mask is None:
        qmf = jnp.zeros((B, LQ), jnp.float32)
    else:
        qmf = q_mask.astype(jnp.float32)
    if LQp != LQ:
        qmf = jnp.pad(qmf, ((0, 0), (0, LQp - LQ)), constant_values=1.0)
    qmf = qmf.reshape(B, LQp, 1)

    grid = (B, LQp // TQ, LMp // TK)

    # ---- VMEM budget from actual buffer math (clamped to chip capacity) ------
    itc = jnp.dtype(cdt).itemsize
    ito = jnp.dtype(out_dtype).itemsize
    est = 2 * (H * TQ * hd * itc + 2 * H * TK * hd * itc      # qh, kh, vh (dbl buf)
               + TK * 4 + TQ * 4                              # kvb, qm
               + D * D * itc + TQ * D * ito)                  # Wo, out tile
    est += H * TQ * (hd + 2) * 4                              # acc, m, l scratch
    est += 2 * H * TQ * TK * 4 + H * TQ * hd * 4 + TQ * D * 4  # s, p, pv, finalize
    vmem_limit = int(min(vmem_cap * 7 // 8, max(2 * est, 48 << 20)))

    kernel = functools.partial(_mhca_attn_kernel,
                               approx_recip=(cdt == jnp.bfloat16))

    out = pl.pallas_call(
        kernel,
        out_shape=jax.ShapeDtypeStruct((B, LQp, D), out_dtype),
        grid=grid,
        in_specs=[
            pl.BlockSpec((H, TQ, hd), lambda b, qi, ki: (b, qi, 0)),   # Q heads
            pl.BlockSpec((H, TK, hd), lambda b, qi, ki: (b, ki, 0)),   # K heads
            pl.BlockSpec((H, TK, hd), lambda b, qi, ki: (b, ki, 0)),   # V heads
            pl.BlockSpec((1, 1, TK), lambda b, qi, ki: (b, 0, ki)),    # kv bias
            pl.BlockSpec((1, TQ, 1), lambda b, qi, ki: (b, qi, 0)),    # q mask
            pl.BlockSpec((D, D), lambda b, qi, ki: (0, 0)),            # Wo^T
        ],
        out_specs=pl.BlockSpec((1, TQ, D), lambda b, qi, ki: (b, qi, 0)),
        scratch_shapes=[
            pltpu.VMEM((H, TQ, 1), jnp.float32),    # running max
            pltpu.VMEM((H, TQ, 1), jnp.float32),    # running sum
            pltpu.VMEM((H, TQ, hd), jnp.float32),   # output accumulator
        ],
        compiler_params=pltpu.CompilerParams(
            dimension_semantics=("parallel", "parallel", "arbitrary"),
            vmem_limit_bytes=vmem_limit),
    )(qh, kh, vh, kvb, qmf, wo_t)

    if LQp != LQ:
        out = out[:, :LQ, :]
    return out


def _reference(Qx, Mx, Wq, Wk, Wv, Wo, q_mask, kv_mask, num_heads):
    """Pure-JAX f32 mirror of the PyTorch forward, for validation."""
    B, LQ, D = Qx.shape
    LM = Mx.shape[1]
    hd = D // num_heads
    Q = Qx @ Wq.T
    K = Mx @ Wk.T
    V = Mx @ Wv.T
    Q = Q.reshape(B, LQ, num_heads, hd).transpose(0, 2, 1, 3)
    K = K.reshape(B, LM, num_heads, hd).transpose(0, 2, 1, 3)
    V = V.reshape(B, LM, num_heads, hd).transpose(0, 2, 1, 3)
    logits = jnp.einsum('bhqd,bhkd->bhqk', Q, K) / math.sqrt(hd)
    if kv_mask is not None:
        logits = jnp.where(kv_mask[:, None, None, :], -1000000000.0, logits)
    w = jax.nn.softmax(logits, axis=-1)
    o = jnp.einsum('bhqk,bhkd->bhqd', w, V)
    o = o.transpose(0, 2, 1, 3).reshape(B, LQ, D)
    out = o @ Wo.T
    if q_mask is not None:
        out = jnp.where(q_mask[:, :, None], 0.0, out)
    return out


if __name__ == "__main__":
    B, LQ, LM, D, H = 2, 8, 16, 32, 4

    key = jax.random.PRNGKey(0)
    ks = jax.random.split(key, 10)
    bound = 1.0 / math.sqrt(D)   # PyTorch nn.Linear default init range
    Qx = jax.random.normal(ks[0], (B, LQ, D), jnp.float32)
    Mx = jax.random.normal(ks[1], (B, LM, D), jnp.float32)
    Wq = jax.random.uniform(ks[2], (D, D), jnp.float32, -bound, bound)
    Wk = jax.random.uniform(ks[3], (D, D), jnp.float32, -bound, bound)
    Wv = jax.random.uniform(ks[4], (D, D), jnp.float32, -bound, bound)
    Wo = jax.random.uniform(ks[5], (D, D), jnp.float32, -bound, bound)
    q_mask = jax.random.bernoulli(ks[6], 0.25, (B, LQ))
    kv_mask = jax.random.bernoulli(ks[7], 0.25, (B, LM))

    ref = _reference(Qx, Mx, Wq, Wk, Wv, Wo, q_mask, kv_mask, H)

    # bf16 MXU path (default precision contract; approx reciprocal in softmax).
    params_bf16 = prepare_mhca_params(Wq, Wk, Wv, Wo, compute_dtype=jnp.bfloat16)
    out_bf16 = multi_head_cross_attention(Qx, Mx, params_bf16, q_mask, kv_mask,
                                          num_heads=H)
    out_bf16 = jax.block_until_ready(out_bf16)
    np.testing.assert_allclose(np.asarray(out_bf16), np.asarray(ref),
                               rtol=2e-2, atol=2e-2)

    # f32 path: tight check that the fused online-softmax math is exact.
    params_f32 = prepare_mhca_params(Wq, Wk, Wv, Wo, compute_dtype=jnp.float32)
    out_f32 = multi_head_cross_attention(Qx, Mx, params_f32, q_mask, kv_mask,
                                         num_heads=H)
    out_f32 = jax.block_until_ready(out_f32)
    np.testing.assert_allclose(np.asarray(out_f32), np.asarray(ref),
                               rtol=1e-4, atol=1e-5)

    # Ragged shapes exercising the LQ/LM padding path (no masks).
    LQ2, LM2 = 5, 13
    Qx2 = jax.random.normal(ks[8], (B, LQ2, D), jnp.float32)
    Mx2 = jax.random.normal(ks[9], (B, LM2, D), jnp.float32)
    ref2 = _reference(Qx2, Mx2, Wq, Wk, Wv, Wo, None, None, H)
    out2 = multi_head_cross_attention(Qx2, Mx2, params_f32, None, None,
                                      num_heads=H)
    out2 = jax.block_until_ready(out2)
    np.testing.assert_allclose(np.asarray(out2), np.asarray(ref2),
                               rtol=1e-4, atol=1e-5)

    print("KERNEL_OK")
</pallas_src>

<mosaic_0001>
module attributes {stable_mosaic.version = 11 : i64} {
  func.func @_mhca_attn_kernel(%arg0: i32, %arg1: i32, %arg2: i32, %arg3: memref<4x8x8xbf16, #tpu.memory_space<vmem>>, %arg4: memref<4x16x8xbf16, #tpu.memory_space<vmem>>, %arg5: memref<4x16x8xbf16, #tpu.memory_space<vmem>>, %arg6: memref<1x1x16xf32, #tpu.memory_space<vmem>>, %arg7: memref<1x8x1xf32, #tpu.memory_space<vmem>>, %arg8: memref<32x32xbf16, #tpu.memory_space<vmem>>, %arg9: memref<1x8x32xf32, #tpu.memory_space<vmem>>, %arg10: memref<4x8x1xf32, #tpu.memory_space<vmem>>, %arg11: memref<4x8x1xf32, #tpu.memory_space<vmem>>, %arg12: memref<4x8x8xf32, #tpu.memory_space<vmem>>) attributes {dimension_semantics = [#tpu.dimension_semantics<parallel>, #tpu.dimension_semantics<parallel>, #tpu.dimension_semantics<arbitrary>], iteration_bounds = array<i64: 2, 1, 1>, scalar_prefetch = 0 : i64, scratch_operands = 3 : i64, tpu.core_type = #tpu.core_type<tc>, window_params = [{transform_indices = @transform_0, window_bounds = array<i64: 4, 8, 8>}, {transform_indices = @transform_1, window_bounds = array<i64: 4, 16, 8>}, {transform_indices = @transform_2, window_bounds = array<i64: 4, 16, 8>}, {transform_indices = @transform_3, window_bounds = array<i64: 1, 1, 16>}, {transform_indices = @transform_4, window_bounds = array<i64: 1, 8, 1>}, {pipeline_mode = #tpu.pipeline_mode<synchronous>, transform_indices = @transform_5, window_bounds = array<i64: 32, 32>}, {transform_indices = @transform_6, window_bounds = array<i64: 1, 8, 32>}]} {
    %c0_i32 = arith.constant 0 : i32
    %0 = arith.cmpi eq, %arg2, %c0_i32 : i32
    %1 = arith.extui %0 : i1 to i32
    %c0_i32_0 = arith.constant 0 : i32
    %2 = arith.cmpi ne, %1, %c0_i32_0 : i32
    scf.if %2 {
      %cst_35 = arith.constant 0xFF800000 : f32
      %36 = vector.broadcast %cst_35 : f32 to vector<4x8x1xf32>
      %c0_36 = arith.constant 0 : index
      %c0_37 = arith.constant 0 : index
      %c0_38 = arith.constant 0 : index
      %37 = vector.load %arg10[%c0_36, %c0_37, %c0_38] : memref<4x8x1xf32, #tpu.memory_space<vmem>>, vector<4x8x1xf32>
      tpu.vector_store %arg10[%c0_36, %c0_37, %c0_38], %36 {strides = array<i32>} : memref<4x8x1xf32, #tpu.memory_space<vmem>>, vector<4x8x1xf32>,
      %cst_39 = arith.constant 0.000000e+00 : f32
      %38 = vector.broadcast %cst_39 : f32 to vector<4x8x1xf32>
      %c0_40 = arith.constant 0 : index
      %c0_41 = arith.constant 0 : index
      %c0_42 = arith.constant 0 : index
      %39 = vector.load %arg11[%c0_40, %c0_41, %c0_42] : memref<4x8x1xf32, #tpu.memory_space<vmem>>, vector<4x8x1xf32>
      tpu.vector_store %arg11[%c0_40, %c0_41, %c0_42], %38 {strides = array<i32>} : memref<4x8x1xf32, #tpu.memory_space<vmem>>, vector<4x8x1xf32>,
      %cst_43 = arith.constant 0.000000e+00 : f32
      %40 = vector.broadcast %cst_43 : f32 to vector<4x8x8xf32>
      %c0_44 = arith.constant 0 : index
      %c0_45 = arith.constant 0 : index
      %c0_46 = arith.constant 0 : index
      %41 = vector.load %arg12[%c0_44, %c0_45, %c0_46] : memref<4x8x8xf32, #tpu.memory_space<vmem>>, vector<4x8x8xf32>
      tpu.vector_store %arg12[%c0_44, %c0_45, %c0_46], %40 {strides = array<i32>} : memref<4x8x8xf32, #tpu.memory_space<vmem>>, vector<4x8x8xf32>,
    } else {
    }
    %c0 = arith.constant 0 : index
    %c0_1 = arith.constant 0 : index
    %c0_2 = arith.constant 0 : index
    %3 = vector.load %arg3[%c0, %c0_1, %c0_2] : memref<4x8x8xbf16, #tpu.memory_space<vmem>>, vector<4x8x8xbf16>
    %c0_3 = arith.constant 0 : index
    %c0_4 = arith.constant 0 : index
    %c0_5 = arith.constant 0 : index
    %4 = vector.load %arg4[%c0_3, %c0_4, %c0_5] : memref<4x16x8xbf16, #tpu.memory_space<vmem>>, vector<4x16x8xbf16>
    %c0_6 = arith.constant 0 : index
    %c0_7 = arith.constant 0 : index
    %c0_8 = arith.constant 0 : index
    %5 = vector.load %arg5[%c0_6, %c0_7, %c0_8] : memref<4x16x8xbf16, #tpu.memory_space<vmem>>, vector<4x16x8xbf16>
    "tpu.trace_start"() <{level = 10 : i32, message = "hqe,hke->hqk"}> : () -> ()
    %cst = arith.constant dense<0.000000e+00> : vector<4x8x16xf32>
    %6 = tpu.matmul %3, %4, %cst {dimension_numbers = #tpu.dot_dimension_numbers<[2], [2], [1], [1], [0, 0, 0, 1, 1, 1], [0], [0]>} : vector<4x8x8xbf16>, vector<4x16x8xbf16>, vector<4x8x16xf32> -> vector<4x8x16xf32>
    "tpu.trace_stop"() : () -> ()
    %c0_9 = arith.constant 0 : index
    %c0_10 = arith.constant 0 : index
    %c0_11 = arith.constant 0 : index
    %7 = vector.load %arg6[%c0_9, %c0_10, %c0_11] : memref<1x1x16xf32, #tpu.memory_space<vmem>>, vector<1x1x16xf32>
    %8 = vector.broadcast %7 : vector<1x1x16xf32> to vector<4x8x16xf32>
    %9 = arith.addf %6, %8 : vector<4x8x16xf32>
    %c0_12 = arith.constant 0 : index
    %c0_13 = arith.constant 0 : index
    %c0_14 = arith.constant 0 : index
    %10 = vector.load %arg10[%c0_12, %c0_13, %c0_14] : memref<4x8x1xf32, #tpu.memory_space<vmem>>, vector<4x8x1xf32>
    %cst_15 = arith.constant dense<0xFF800000> : vector<4x8xf32>
    %11 = vector.multi_reduction <maximumf>, %9, %cst_15 [2] : vector<4x8x16xf32> to vector<4x8xf32>
    %12 = vector.shape_cast %11 : vector<4x8xf32> to vector<4x8x1xf32>
    %13 = arith.maximumf %10, %12 : vector<4x8x1xf32>
    %14 = arith.subf %10, %13 : vector<4x8x1xf32>
    %15 = math.exp %14 : vector<4x8x1xf32>
    %16 = vector.broadcast %13 : vector<4x8x1xf32> to vector<4x8x16xf32>
    %17 = arith.subf %9, %16 : vector<4x8x16xf32>
    %18 = math.exp %17 : vector<4x8x16xf32>
    %c0_16 = arith.constant 0 : index
    %c0_17 = arith.constant 0 : index
    %c0_18 = arith.constant 0 : index
    %19 = vector.load %arg11[%c0_16, %c0_17, %c0_18] : memref<4x8x1xf32, #tpu.memory_space<vmem>>, vector<4x8x1xf32>
    %20 = arith.mulf %15, %19 : vector<4x8x1xf32>
    %cst_19 = arith.constant dense<0.000000e+00> : vector<4x8xf32>
    %21 = vector.multi_reduction <add>, %18, %cst_19 [2] : vector<4x8x16xf32> to vector<4x8xf32>
    %22 = vector.shape_cast %21 : vector<4x8xf32> to vector<4x8x1xf32>
    %23 = arith.addf %20, %22 : vector<4x8x1xf32>
    %c0_20 = arith.constant 0 : index
    %c0_21 = arith.constant 0 : index
    %c0_22 = arith.constant 0 : index
    %24 = vector.load %arg11[%c0_20, %c0_21, %c0_22] : memref<4x8x1xf32, #tpu.memory_space<vmem>>, vector<4x8x1xf32>
    tpu.vector_store %arg11[%c0_20, %c0_21, %c0_22], %23 {strides = array<i32>} : memref<4x8x1xf32, #tpu.memory_space<vmem>>, vector<4x8x1xf32>,
    %c0_23 = arith.constant 0 : index
    %c0_24 = arith.constant 0 : index
    %c0_25 = arith.constant 0 : index
    %25 = vector.load %arg12[%c0_23, %c0_24, %c0_25] : memref<4x8x8xf32, #tpu.memory_space<vmem>>, vector<4x8x8xf32>
    %26 = vector.broadcast %15 : vector<4x8x1xf32> to vector<4x8x8xf32>
    %27 = arith.mulf %26, %25 : vector<4x8x8xf32>
    %28 = arith.truncf %18 : vector<4x8x16xf32> to vector<4x8x16xbf16>
    "tpu.trace_start"() <{level = 10 : i32, message = "hqk,hke->hqe"}> : () -> ()
    %cst_26 = arith.constant dense<0.000000e+00> : vector<4x8x8xf32>
    %29 = tpu.matmul %28, %5, %cst_26 {dimension_numbers = #tpu.dot_dimension_numbers<[2], [1], [1], [2], [0, 0, 0, 1, 1, 2], [0], [0]>} : vector<4x8x16xbf16>, vector<4x16x8xbf16>, vector<4x8x8xf32> -> vector<4x8x8xf32>
    "tpu.trace_stop"() : () -> ()
    %30 = arith.addf %27, %29 : vector<4x8x8xf32>
    %c0_27 = arith.constant 0 : index
    %c0_28 = arith.constant 0 : index
    %c0_29 = arith.constant 0 : index
    %31 = vector.load %arg12[%c0_27, %c0_28, %c0_29] : memref<4x8x8xf32, #tpu.memory_space<vmem>>, vector<4x8x8xf32>
    tpu.vector_store %arg12[%c0_27, %c0_28, %c0_29], %30 {strides = array<i32>} : memref<4x8x8xf32, #tpu.memory_space<vmem>>, vector<4x8x8xf32>,
    %c0_30 = arith.constant 0 : index
    %c0_31 = arith.constant 0 : index
    %c0_32 = arith.constant 0 : index
    %32 = vector.load %arg10[%c0_30, %c0_31, %c0_32] : memref<4x8x1xf32, #tpu.memory_space<vmem>>, vector<4x8x1xf32>
    tpu.vector_store %arg10[%c0_30, %c0_31, %c0_32], %13 {strides = array<i32>} : memref<4x8x1xf32, #tpu.memory_space<vmem>>, vector<4x8x1xf32>,
    %c0_i32_33 = arith.constant 0 : i32
    %33 = arith.cmpi eq, %arg2, %c0_i32_33 : i32
    %34 = arith.extui %33 : i1 to i32
    %c0_i32_34 = arith.constant 0 : i32
    %35 = arith.cmpi ne, %34, %c0_i32_34 : i32
    scf.if %35 {
      %c0_35 = arith.constant 0 : index
      %c0_36 = arith.constant 0 : index
      %c0_37 = arith.constant 0 : index
      %36 = vector.load %arg11[%c0_35, %c0_36, %c0_37] : memref<4x8x1xf32, #tpu.memory_space<vmem>>, vector<4x8x1xf32>
      %37 = tpu.reciprocal %36 {approx = true} : vector<4x8x1xf32> -> vector<4x8x1xf32>
      %c0_38 = arith.constant 0 : index
      %c0_39 = arith.constant 0 : index
      %c0_40 = arith.constant 0 : index
      %38 = vector.load %arg12[%c0_38, %c0_39, %c0_40] : memref<4x8x8xf32, #tpu.memory_space<vmem>>, vector<4x8x8xf32>
      %39 = vector.broadcast %37 : vector<4x8x1xf32> to vector<4x8x8xf32>
      %40 = arith.mulf %38, %39 : vector<4x8x8xf32>
      %41 = arith.truncf %40 : vector<4x8x8xf32> to vector<4x8x8xbf16>
      %42 = tpu.transpose %41, [1, 0, 2] : vector<4x8x8xbf16> -> vector<8x4x8xbf16>
      %43 = vector.shape_cast %42 : vector<8x4x8xbf16> to vector<8x32xbf16>
      %c0_41 = arith.constant 0 : index
      %c0_42 = arith.constant 0 : index
      %44 = vector.load %arg8[%c0_41, %c0_42] : memref<32x32xbf16, #tpu.memory_space<vmem>>, vector<32x32xbf16>
      %cst_43 = arith.constant dense<0.000000e+00> : vector<8x32xf32>
      %45 = tpu.matmul %43, %44, %cst_43 {dimension_numbers = #tpu.dot_dimension_numbers<[1], [0], [0], [1], [0, 0, 1, 1], [], []>} : vector<8x32xbf16>, vector<32x32xbf16>, vector<8x32xf32> -> vector<8x32xf32>
      %c0_44 = arith.constant 0 : index
      %c0_45 = arith.constant 0 : index
      %c0_46 = arith.constant 0 : index
      %46 = vector.load %arg7[%c0_44, %c0_45, %c0_46] : memref<1x8x1xf32, #tpu.memory_space<vmem>>, vector<1x8x1xf32>
      %47 = vector.shape_cast %46 : vector<1x8x1xf32> to vector<8x1xf32>
      %cst_47 = arith.constant 5.000000e-01 : f32
      %48 = vector.broadcast %cst_47 : f32 to vector<8x1xf32>
      %49 = arith.cmpf ogt, %47, %48 : vector<8x1xf32>
      %cst_48 = arith.constant 0.000000e+00 : f32
      %50 = vector.shape_cast %49 : vector<8x1xi1> to vector<8x1xi1>
      %51 = vector.broadcast %50 : vector<8x1xi1> to vector<8x32xi1>
      %52 = vector.broadcast %cst_48 : f32 to vector<8x32xf32>
      %53 = arith.select %51, %52, %45 : vector<8x32xi1>, vector<8x32xf32>
      %c0_49 = arith.constant 0 : index
      %c0_50 = arith.constant 0 : index
      %c0_51 = arith.constant 0 : index
      %54 = vector.load %arg9[%c0_49, %c0_50, %c0_51] : memref<1x8x32xf32, #tpu.memory_space<vmem>>, vector<1x8x32xf32>
      %55 = vector.shape_cast %54 : vector<1x8x32xf32> to vector<8x32xf32>
      %56 = vector.shape_cast %53 : vector<8x32xf32> to vector<1x8x32xf32>
      tpu.vector_store %arg9[%c0_49, %c0_50, %c0_51], %56 {strides = array<i32>} : memref<1x8x32xf32, #tpu.memory_space<vmem>>, vector<1x8x32xf32>,
    } else {
    }
    return
  }
  func.func @transform_0(%arg0: i32, %arg1: i32, %arg2: i32) -> (i32, i32, i32) {
    %c0_i32 = arith.constant 0 : i32
    %c0_i32_0 = arith.constant 0 : i32
    return %arg0, %arg1, %c0_i32 : i32, i32, i32
  }
  func.func @transform_1(%arg0: i32, %arg1: i32, %arg2: i32) -> (i32, i32, i32) {
    %c0_i32 = arith.constant 0 : i32
    %c0_i32_0 = arith.constant 0 : i32
    return %arg0, %arg2, %c0_i32 : i32, i32, i32
  }
  func.func @transform_2(%arg0: i32, %arg1: i32, %arg2: i32) -> (i32, i32, i32) {
    %c0_i32 = arith.constant 0 : i32
    %c0_i32_0 = arith.constant 0 : i32
    return %arg0, %arg2, %c0_i32 : i32, i32, i32
  }
  func.func @transform_3(%arg0: i32, %arg1: i32, %arg2: i32) -> (i32, i32, i32) {
    %c0_i32 = arith.constant 0 : i32
    %c0_i32_0 = arith.constant 0 : i32
    return %arg0, %c0_i32, %arg2 : i32, i32, i32
  }
  func.func @transform_4(%arg0: i32, %arg1: i32, %arg2: i32) -> (i32, i32, i32) {
    %c0_i32 = arith.constant 0 : i32
    %c0_i32_0 = arith.constant 0 : i32
    return %arg0, %arg1, %c0_i32 : i32, i32, i32
  }
  func.func @transform_5(%arg0: i32, %arg1: i32, %arg2: i32) -> (i32, i32) {
    %c0_i32 = arith.constant 0 : i32
    %c0_i32_0 = arith.constant 0 : i32
    %c0_i32_1 = arith.constant 0 : i32
    return %c0_i32, %c0_i32_0 : i32, i32
  }
  func.func @transform_6(%arg0: i32, %arg1: i32, %arg2: i32) -> (i32, i32, i32) {
    %c0_i32 = arith.constant 0 : i32
    %c0_i32_0 = arith.constant 0 : i32
    return %arg0, %arg1, %c0_i32 : i32, i32, i32
  }
}

</mosaic_0001>

<llo_original>
// kernel: tpu_custom_call.1
$region0: #{tpu_custom_call.1}
  #allocation0 [shape = 'u32[]', space=smem, size = 0x4, offset = 0x4, fixed_abs, tag = 'smem constant byte address 0x4 - core index']
  #allocation1 [shape = 'u32[144,128]{1,0:T(1,128)}', space=vmem, size = 0x12000, scoped, tag = 'internal scratch']
  #allocation2 [shape = 'f32[4,8,1]{2,1,0:T(8,128)}', space=vmem, size = 0x4000, scoped, tag = 'scratch operand']
  #allocation3 [shape = 'f32[4,8,1]{2,1,0:T(8,128)}', space=vmem, size = 0x4000, scoped, tag = 'scratch operand']
  #allocation4 [shape = 'f32[4,8,8]{2,1,0:T(8,128)}', space=vmem, size = 0x4000, scoped, tag = 'scratch operand']
  %s0 = inlined_call_operand.vmem [shape: bf16[8,8,8], index: 0, kind: input, shape index: {}]
  %s1 = inlined_call_operand.vmem [shape: bf16[8,16,8], index: 1, kind: input, shape index: {}]
  %s2 = inlined_call_operand.vmem [shape: bf16[8,16,8], index: 2, kind: input, shape index: {}]
  %s3 = inlined_call_operand.vmem [shape: f32[2,1,16], index: 3, kind: input, shape index: {}]
  %s4 = inlined_call_operand.vmem [shape: f32[2,8,1], index: 4, kind: input, shape index: {}]
  %s5 = inlined_call_operand.vmem [shape: bf16[32,32], index: 5, kind: input, shape index: {}]
  %s6 = inlined_call_operand.hbm [shape: f32[2,8,32], index: 6, kind: output, shape index: {}]
  %s7 = sld [smem:[#allocation0]]
  $region65: #{tpu_custom_call.1} parent=0
    _
  %s9 = ssub.s32 1, %s7
  %s10 = scalar_select 0, %s9, %s7
  $region1: #{tpu_custom_call.1} parent=0
    #allocation5 [shape = 'u8[8192]{0}', space=vmem, size = 0x2000, scoped, tag = 'output window, operand 0']
    #allocation6 [shape = 's32[2]{0}', space=sflag, size = 0x8, scoped, tag = 'scoped memory for tpu_custom_call.1']
    %11 = vsyncpa [#allocation6], 0
    %s12 = scalar_lea.sflag [#allocation6], 1
    %13 = vsyncpa %s12, 0
    loop: start=0, step=1, limit=4
    $region2: #{tpu_custom_call.1} parent=1 // loop_pre_header
      _
    $region3: #{tpu_custom_call.1} parent=1 // loop_header
      %s15 = sphi 0, %s19
      %p16 = scmp.ge.s32.totalorder %s15, 4
      %s22 = sphi 0, %s41
      %s23 = sphi 0, %s37
      %s24 = sphi 0, %s33
      %s25 = sphi 0, %s22
      %s26 = sphi 0, %s23
      %s27 = sphi 0, %s24
      %s28 = sphi 0, %s25
      %s29 = sphi 0, %s26
      %s30 = sphi 0, %s27
      %s46 = sphi 0, %s48
      %s49 = sphi 0, %s46
      %s50 = sphi 0, %s49
      %s66 = sphi 0, %s50
      %s74 = sphi 0, %s76
      %s77 = sphi 0, %s74
      %s78 = sphi 0, %s77
      %s94 = sphi 0, %s78
      %s102 = sphi 0, %s104
      %s105 = sphi 0, %s102
      %s106 = sphi 0, %s105
      %s122 = sphi 0, %s106
      %s130 = sphi 0, %s132
      %s133 = sphi 0, %s130
      %s134 = sphi 0, %s133
      %s150 = sphi 0, %s134
      %s158 = sphi 0, %s160
      %s161 = sphi 0, %s158
      %s162 = sphi 0, %s161
      %s178 = sphi 0, %s162
      %s182 = sphi 0, %s182
      %s184 = sphi 0, %s182
      %s185 = sphi 0, %s184
      %s199 = sphi 0, %s185
      %s207 = sphi 0, %s209
      %s210 = sphi 0, %s207
      %s211 = sphi 0, %s210
      %s227 = sphi 0, %s211
    $region4: #{tpu_custom_call.1} parent=1 // loop_header_branch
      %18 = sbr.rel (%p16) target = $region8
    $region5: #{tpu_custom_call.1} parent=1 // loop_body
      %s20 = ssub.s32 %s15, 1
      %s21 = ssub.s32 %s15, 2
      %s31 = sadd.s32 1, %s24
      %p32 = scmp.ge.s32.totalorder %s31, 1
      %s33 = scalar_select %p32, 0, %s31
      %s34 = sadd.s32 1, %s23
      %s35 = scalar_select %p32, %s34, %s23
      %p36 = scmp.ge.s32.totalorder %s35, 1
      %s37 = scalar_select %p36, 0, %s35
      %s38 = sadd.s32 1, %s22
      %s39 = scalar_select %p36, %s38, %s22
      %p40 = scmp.ge.s32.totalorder %s39, 2
      %s41 = scalar_select %p40, 0, %s39
      %s42 = ssub.s32 %s22, %s41
      %s43 = ssub.s32 %s23, %s37
      %s44 = sor.u32 %s42, %s43
      %p45 = scmp.eq.s32.totalorder %s44, 0
      %s47 = sadd.s32 %s46, 1
      %s48 = scalar_select %p45, %s46, %s47
      %p51 = pneg %p45
      %p52 = scmp.eq.s32.totalorder %s15, 1
      %p53 = por %p51, %p52
      %p54 = scmp.ne.s32.totalorder %s46, %s49
      %p55 = scmp.eq.s32.totalorder %s15, 0
      %p56 = por %p54, %p55
      %p57 = scmp.ne.s32.totalorder %s46, %s49
      %p58 = scmp.eq.s32.totalorder %s20, 1
      %p59 = por %p57, %p58
      %p60 = scmp.ne.s32.totalorder %s49, %s50
      %p61 = scmp.eq.s32.totalorder %s20, 0
      %p62 = por %p60, %p61
      %p63 = scmp.ne.s32.totalorder %s49, %s50
      %p64 = scmp.eq.s32.totalorder %s21, 1
      %p65 = por %p63, %p64
      %p67 = scmp.ne.s32.totalorder %s50, %s66
      %p68 = scmp.eq.s32.totalorder %s21, 0
      %p69 = por %p67, %p68
      %s70 = ssub.s32 %s22, %s41
      %s71 = ssub.s32 %s24, %s33
      %s72 = sor.u32 %s70, %s71
      %p73 = scmp.eq.s32.totalorder %s72, 0
      %s75 = sadd.s32 %s74, 1
      %s76 = scalar_select %p73, %s74, %s75
      %p79 = pneg %p73
      %p80 = scmp.eq.s32.totalorder %s15, 1
      %p81 = por %p79, %p80
      %p82 = scmp.ne.s32.totalorder %s74, %s77
      %p83 = scmp.eq.s32.totalorder %s15, 0
      %p84 = por %p82, %p83
      %p85 = scmp.ne.s32.totalorder %s74, %s77
      %p86 = scmp.eq.s32.totalorder %s20, 1
      %p87 = por %p85, %p86
      %p88 = scmp.ne.s32.totalorder %s77, %s78
      %p89 = scmp.eq.s32.totalorder %s20, 0
      %p90 = por %p88, %p89
      %p91 = scmp.ne.s32.totalorder %s77, %s78
      %p92 = scmp.eq.s32.totalorder %s21, 1
      %p93 = por %p91, %p92
      %p95 = scmp.ne.s32.totalorder %s78, %s94
      %p96 = scmp.eq.s32.totalorder %s21, 0
      %p97 = por %p95, %p96
      %s98 = ssub.s32 %s22, %s41
      %s99 = ssub.s32 %s24, %s33
      %s100 = sor.u32 %s98, %s99
      %p101 = scmp.eq.s32.totalorder %s100, 0
      %s103 = sadd.s32 %s102, 1
      %s104 = scalar_select %p101, %s102, %s103
      %p107 = pneg %p101
      %p108 = scmp.eq.s32.totalorder %s15, 1
      %p109 = por %p107, %p108
      %p110 = scmp.ne.s32.totalorder %s102, %s105
      %p111 = scmp.eq.s32.totalorder %s15, 0
      %p112 = por %p110, %p111
      %p113 = scmp.ne.s32.totalorder %s102, %s105
      %p114 = scmp.eq.s32.totalorder %s20, 1
      %p115 = por %p113, %p114
      %p116 = scmp.ne.s32.totalorder %s105, %s106
      %p117 = scmp.eq.s32.totalorder %s20, 0
      %p118 = por %p116, %p117
      %p119 = scmp.ne.s32.totalorder %s105, %s106
      %p120 = scmp.eq.s32.totalorder %s21, 1
      %p121 = por %p119, %p120
      %p123 = scmp.ne.s32.totalorder %s106, %s122
      %p124 = scmp.eq.s32.totalorder %s21, 0
      %p125 = por %p123, %p124
      %s126 = ssub.s32 %s22, %s41
      %s127 = ssub.s32 %s24, %s33
      %s128 = sor.u32 %s126, %s127
      %p129 = scmp.eq.s32.totalorder %s128, 0
      %s131 = sadd.s32 %s130, 1
      %s132 = scalar_select %p129, %s130, %s131
      %p135 = pneg %p129
      %p136 = scmp.eq.s32.totalorder %s15, 1
      %p137 = por %p135, %p136
      %p138 = scmp.ne.s32.totalorder %s130, %s133
      %p139 = scmp.eq.s32.totalorder %s15, 0
      %p140 = por %p138, %p139
      %p141 = scmp.ne.s32.totalorder %s130, %s133
      %p142 = scmp.eq.s32.totalorder %s20, 1
      %p143 = por %p141, %p142
      %p144 = scmp.ne.s32.totalorder %s133, %s134
      %p145 = scmp.eq.s32.totalorder %s20, 0
      %p146 = por %p144, %p145
      %p147 = scmp.ne.s32.totalorder %s133, %s134
      %p148 = scmp.eq.s32.totalorder %s21, 1
      %p149 = por %p147, %p148
      %p151 = scmp.ne.s32.totalorder %s134, %s150
      %p152 = scmp.eq.s32.totalorder %s21, 0
      %p153 = por %p151, %p152
      %s154 = ssub.s32 %s22, %s41
      %s155 = ssub.s32 %s23, %s37
      %s156 = sor.u32 %s154, %s155
      %p157 = scmp.eq.s32.totalorder %s156, 0
      %s159 = sadd.s32 %s158, 1
      %s160 = scalar_select %p157, %s158, %s159
      %p163 = pneg %p157
      %p164 = scmp.eq.s32.totalorder %s15, 1
      %p165 = por %p163, %p164
      %p166 = scmp.ne.s32.totalorder %s158, %s161
      %p167 = scmp.eq.s32.totalorder %s15, 0
      %p168 = por %p166, %p167
      %p169 = scmp.ne.s32.totalorder %s158, %s161
      %p170 = scmp.eq.s32.totalorder %s20, 1
      %p171 = por %p169, %p170
      %p172 = scmp.ne.s32.totalorder %s161, %s162
      %p173 = scmp.eq.s32.totalorder %s20, 0
      %p174 = por %p172, %p173
      %p175 = scmp.ne.s32.totalorder %s161, %s162
      %p176 = scmp.eq.s32.totalorder %s21, 1
      %p177 = por %p175, %p176
      %p179 = scmp.ne.s32.totalorder %s162, %s178
      %p180 = scmp.eq.s32.totalorder %s21, 0
      %p181 = por %p179, %p180
      %s183 = sadd.s32 %s182, 1
      %p186 = scmp.eq.s32.totalorder %s15, 1
      %p187 = scmp.ne.s32.totalorder %s182, %s184
      %p188 = scmp.eq.s32.totalorder %s15, 0
      %p189 = por %p187, %p188
      %p190 = scmp.ne.s32.totalorder %s182, %s184
      %p191 = scmp.eq.s32.totalorder %s20, 1
      %p192 = por %p190, %p191
      %p193 = scmp.ne.s32.totalorder %s184, %s185
      %p194 = scmp.eq.s32.totalorder %s20, 0
      %p195 = por %p193, %p194
      %p196 = scmp.ne.s32.totalorder %s184, %s185
      %p197 = scmp.eq.s32.totalorder %s21, 1
      %p198 = por %p196, %p197
      %p200 = scmp.ne.s32.totalorder %s185, %s199
      %p201 = scmp.eq.s32.totalorder %s21, 0
      %p202 = por %p200, %p201
      %s203 = ssub.s32 %s22, %s41
      %s204 = ssub.s32 %s23, %s37
      %s205 = sor.u32 %s203, %s204
      %p206 = scmp.eq.s32.totalorder %s205, 0
      %s208 = sadd.s32 %s207, 1
      %s209 = scalar_select %p206, %s207, %s208
      %p212 = pneg %p206
      %p213 = scmp.eq.s32.totalorder %s15, 1
      %p214 = por %p212, %p213
      %p215 = scmp.ne.s32.totalorder %s207, %s210
      %p216 = scmp.eq.s32.totalorder %s15, 0
      %p217 = por %p215, %p216
      %p218 = scmp.ne.s32.totalorder %s207, %s210
      %p219 = scmp.eq.s32.totalorder %s20, 1
      %p220 = por %p218, %p219
      %p221 = scmp.ne.s32.totalorder %s210, %s211
      %p222 = scmp.eq.s32.totalorder %s20, 0
      %p223 = por %p221, %p222
      %p224 = scmp.ne.s32.totalorder %s210, %s211
      %p225 = scmp.eq.s32.totalorder %s21, 1
      %p226 = por %p224, %p225
      %p228 = scmp.ne.s32.totalorder %s211, %s227
      %p229 = scmp.eq.s32.totalorder %s21, 0
      %p230 = por %p228, %p229
      %p231 = scmp.le.s32.totalorder 1, %s15
      %p232 = scmp.lt.s32.totalorder %s15, 3
      %p233 = pnand %p231, %p232
      %p234 = pneg %p233
      // Predicated region
      $region9: #{tpu_custom_call.1} parent=5 // pred_check
        _
      $region10: #{tpu_custom_call.1} parent=5 // pred_check_branch
        %236 = sbr.rel (%p233) target = $region12
      $region11: #{tpu_custom_call.1} parent=5 // pred_region
        %s237 = ssub.s32 %s15, 1
        // Predicated region
        $region13: #{tpu_custom_call.1} parent=11 // pred_check
          %p238 = pneg %p195
        $region14: #{tpu_custom_call.1} parent=11 // pred_check_branch
          %240 = sbr.rel (%p238) target = $region16
        $region15: #{tpu_custom_call.1} parent=11 // pred_region
          _
        $region16: #{tpu_custom_call.1} parent=11 // pred_fallthru
          _
      $region12: #{tpu_custom_call.1} parent=5 // pred_fallthru
        _
      %p241 = scmp.lt.s32.totalorder %s15, 2
      // Predicated region
      $region17: #{tpu_custom_call.1} parent=5 // pred_check
        %p242 = pneg %p241
      $region18: #{tpu_custom_call.1} parent=5 // pred_check_branch
        %244 = sbr.rel (%p242) target = $region20
      $region19: #{tpu_custom_call.1} parent=5 // pred_region
        // Predicated region
        $region21: #{tpu_custom_call.1} parent=19 // pred_check
          %p245 = pneg %p56
        $region22: #{tpu_custom_call.1} parent=19 // pred_check_branch
          %247 = sbr.rel (%p245) target = $region24
        $region23: #{tpu_custom_call.1} parent=19 // pred_region
          %s248 = smul.u32 4, %s22
          %p249 = scmp.lt.s32.totalorder %s248, 7
          %s250 = scalar_select %p249, %s248, 7
          %p251 = scmp.lt.s32.totalorder %s23, 0
          %s252 = scalar_select %p251, %s23, 0
          %s253 = sadd.s32 %s252, %s250
          %s254 = smul.addr %s253, 4
          %s255 = scalar_lea.vmem %s0, %s254
          %s256 = smul.u32 4, %s22
        $region24: #{tpu_custom_call.1} parent=19 // pred_fallthru
          _
        // Predicated region
        $region25: #{tpu_custom_call.1} parent=19 // pred_check
          %p257 = pneg %p84
        $region26: #{tpu_custom_call.1} parent=19 // pred_check_branch
          %259 = sbr.rel (%p257) target = $region28
        $region27: #{tpu_custom_call.1} parent=19 // pred_region
          %s260 = smul.u32 4, %s22
          %s261 = smul.u32 2, %s24
          %p262 = scmp.lt.s32.totalorder %s260, 7
          %s263 = scalar_select %p262, %s260, 7
          %p264 = scmp.lt.s32.totalorder %s261, 1
          %s265 = scalar_select %p264, %s261, 1
          %s266 = smul.addr %s263, 2
          %s267 = sadd.s32 %s265, %s266
          %s268 = smul.addr %s267, 4
          %s269 = scalar_lea.vmem %s1, %s268
          %s270 = smul.u32 4, %s22
          %s271 = smul.u32 2, %s24
        $region28: #{tpu_custom_call.1} parent=19 // pred_fallthru
          _
        // Predicated region
        $region29: #{tpu_custom_call.1} parent=19 // pred_check
          %p272 = pneg %p112
        $region30: #{tpu_custom_call.1} parent=19 // pred_check_branch
          %274 = sbr.rel (%p272) target = $region32
        $region31: #{tpu_custom_call.1} parent=19 // pred_region
          %s275 = smul.u32 4, %s22
          %s276 = smul.u32 2, %s24
          %p277 = scmp.lt.s32.totalorder %s275, 7
          %s278 = scalar_select %p277, %s275, 7
          %p279 = scmp.lt.s32.totalorder %s276, 1
          %s280 = scalar_select %p279, %s276, 1
          %s281 = smul.addr %s278, 2
          %s282 = sadd.s32 %s280, %s281
          %s283 = smul.addr %s282, 4
          %s284 = scalar_lea.vmem %s2, %s283
          %s285 = smul.u32 4, %s22
          %s286 = smul.u32 2, %s24
        $region32: #{tpu_custom_call.1} parent=19 // pred_fallthru
          _
        // Predicated region
        $region33: #{tpu_custom_call.1} parent=19 // pred_check
          %p287 = pneg %p140
        $region34: #{tpu_custom_call.1} parent=19 // pred_check_branch
          %289 = sbr.rel (%p287) target = $region36
        $region35: #{tpu_custom_call.1} parent=19 // pred_region
          %p290 = scmp.lt.s32.totalorder %s22, 1
          %s291 = scalar_select %p290, %s22, 1
          %p292 = scmp.lt.s32.totalorder %s24, 0
          %s293 = scalar_select %p292, %s24, 0
          %s294 = sadd.s32 %s293, %s291
          %s295 = scalar_lea.vmem %s3, %s294
        $region36: #{tpu_custom_call.1} parent=19 // pred_fallthru
          _
        // Predicated region
        $region37: #{tpu_custom_call.1} parent=19 // pred_check
          %p296 = pneg %p168
        $region38: #{tpu_custom_call.1} parent=19 // pred_check_branch
          %298 = sbr.rel (%p296) target = $region40
        $region39: #{tpu_custom_call.1} parent=19 // pred_region
          %p299 = scmp.lt.s32.totalorder %s22, 1
          %s300 = scalar_select %p299, %s22, 1
          %p301 = scmp.lt.s32.totalorder %s23, 0
          %s302 = scalar_select %p301, %s23, 0
          %s303 = sadd.s32 %s302, %s300
          %s304 = smul.addr %s303, 8
          %s305 = scalar_lea.vmem %s4, %s304
        $region40: #{tpu_custom_call.1} parent=19 // pred_fallthru
          _
      $region20: #{tpu_custom_call.1} parent=5 // pred_fallthru
        _
      %p306 = scmp.le.s32.totalorder 1, %s15
      %p307 = scmp.lt.s32.totalorder %s15, 3
      %p308 = pnand %p306, %p307
      %p309 = pneg %p308
      // Predicated region
      $region41: #{tpu_custom_call.1} parent=5 // pred_check
        _
      $region42: #{tpu_custom_call.1} parent=5 // pred_check_branch
        %311 = sbr.rel (%p308) target = $region44
      $region43: #{tpu_custom_call.1} parent=5 // pred_region
        %s312 = ssub.s32 %s15, 1
        %s313 = smul.u32 4, %s25
        %p314 = scmp.lt.s32.totalorder %s313, 7
        %s315 = scalar_select %p314, %s313, 7
        %p316 = scmp.lt.s32.totalorder %s26, 0
        %s317 = scalar_select %p316, %s26, 0
        %s318 = sadd.s32 %s317, %s315
        %s319 = smul.addr %s318, 4
        %s320 = scalar_lea.vmem %s0, %s319
        %p321 = pneg %p62
        %p322 = pneg %p59
        %s323 = smul.u32 4, %s25
        %s324 = smul.u32 2, %s27
        %p325 = scmp.lt.s32.totalorder %s323, 7
        %s326 = scalar_select %p325, %s323, 7
        %p327 = scmp.lt.s32.totalorder %s324, 1
        %s328 = scalar_select %p327, %s324, 1
        %s329 = smul.addr %s326, 2
        %s330 = sadd.s32 %s328, %s329
        %s331 = smul.addr %s330, 4
        %s332 = scalar_lea.vmem %s1, %s331
        %p333 = pneg %p90
        %p334 = pneg %p87
        %s335 = smul.u32 4, %s25
        %s336 = smul.u32 2, %s27
        %p337 = scmp.lt.s32.totalorder %s335, 7
        %s338 = scalar_select %p337, %s335, 7
        %p339 = scmp.lt.s32.totalorder %s336, 1
        %s340 = scalar_select %p339, %s336, 1
        %s341 = smul.addr %s338, 2
        %s342 = sadd.s32 %s340, %s341
        %s343 = smul.addr %s342, 4
        %s344 = scalar_lea.vmem %s2, %s343
        %p345 = pneg %p118
        %p346 = pneg %p115
        %p347 = scmp.lt.s32.totalorder %s25, 1
        %s348 = scalar_select %p347, %s25, 1
        %p349 = scmp.lt.s32.totalorder %s27, 0
        %s350 = scalar_select %p349, %s27, 0
        %s351 = sadd.s32 %s350, %s348
        %s352 = scalar_lea.vmem %s3, %s351
        %p353 = pneg %p146
        %p354 = pneg %p143
        %p355 = scmp.lt.s32.totalorder %s25, 1
        %s356 = scalar_select %p355, %s25, 1
        %p357 = scmp.lt.s32.totalorder %s26, 0
        %s358 = scalar_select %p357, %s26, 0
        %s359 = sadd.s32 %s358, %s356
        %s360 = smul.addr %s359, 8
        %s361 = scalar_lea.vmem %s4, %s360
        %p362 = pneg %p174
        %p363 = pneg %p171
        %p364 = pneg %p195
        %p365 = pneg %p192
        %p366 = pneg %p223
        %p367 = pneg %p220
        %s368 = sand.u32 %s210, 1
        %s369 = scalar_lea.sflag [#allocation6], %s368
        %s370 = sand.u32 %s210, 1
        %s371 = smul.addr %s370, 8
        %s372 = scalar_lea.vmem [#allocation5], %s371
        %s373 = smul.u32 4, %s25
        %p374 = scmp.lt.s32.totalorder %s373, 7
        %s375 = scalar_select %p374, %s373, 7
        %p376 = scmp.lt.s32.totalorder %s26, 0
        %s377 = scalar_select %p376, %s26, 0
        %s378 = sadd.s32 %s377, %s375
        %s379 = smul.addr %s378, 4
        %s380 = scalar_lea.vmem %s0, %s379
        %s381 = smul.u32 4, %s25
        %s382 = smul.u32 4, %s25
        %s383 = smul.u32 2, %s27
        %p384 = scmp.lt.s32.totalorder %s382, 7
        %s385 = scalar_select %p384, %s382, 7
        %p386 = scmp.lt.s32.totalorder %s383, 1
        %s387 = scalar_select %p386, %s383, 1
        %s388 = smul.addr %s385, 2
        %s389 = sadd.s32 %s387, %s388
        %s390 = smul.addr %s389, 4
        %s391 = scalar_lea.vmem %s1, %s390
        %s392 = smul.u32 4, %s25
        %s393 = smul.u32 2, %s27
        %s394 = smul.u32 4, %s25
        %s395 = smul.u32 2, %s27
        %p396 = scmp.lt.s32.totalorder %s394, 7
        %s397 = scalar_select %p396, %s394, 7
        %p398 = scmp.lt.s32.totalorder %s395, 1
        %s399 = scalar_select %p398, %s395, 1
        %s400 = smul.addr %s397, 2
        %s401 = sadd.s32 %s399, %s400
        %s402 = smul.addr %s401, 4
        %s403 = scalar_lea.vmem %s2, %s402
        %s404 = smul.u32 4, %s25
        %s405 = smul.u32 2, %s27
        %p406 = scmp.lt.s32.totalorder %s25, 1
        %s407 = scalar_select %p406, %s25, 1
        %p408 = scmp.lt.s32.totalorder %s27, 0
        %s409 = scalar_select %p408, %s27, 0
        %s410 = sadd.s32 %s409, %s407
        %s411 = scalar_lea.vmem %s3, %s410
        %p412 = scmp.lt.s32.totalorder %s25, 1
        %s413 = scalar_select %p412, %s25, 1
        %p414 = scmp.lt.s32.totalorder %s26, 0
        %s415 = scalar_select %p414, %s26, 0
        %s416 = sadd.s32 %s415, %s413
        %s417 = smul.addr %s416, 8
        %s418 = scalar_lea.vmem %s4, %s417
        %p420 = scmp.eq.s32.totalorder %s27, 0
        // Predicated region
        $region45: #{tpu_custom_call.1} parent=43 // pred_check
          %p421 = pneg %p420
        $region46: #{tpu_custom_call.1} parent=43 // pred_check_branch
          %423 = sbr.rel (%p421) target = $region48
        $region47: #{tpu_custom_call.1} parent=43 // pred_region
          %vm424 = vcmask 7168
          %425 = vst.msk [vmem:[#allocation2] sm:$0xff] %vm424, -inf
          %426 = vst.msk [vmem:[#allocation2 + $0x8] sm:$0xff] %vm424, -inf
          %427 = vst.msk [vmem:[#allocation2 + $0x10] sm:$0xff] %vm424, -inf
          %428 = vst.msk [vmem:[#allocation2 + $0x18] sm:$0xff] %vm424, -inf
          %429 = vst.msk [vmem:[#allocation3] sm:$0xff] %vm424, 0.0
          %430 = vst.msk [vmem:[#allocation3 + $0x8] sm:$0xff] %vm424, 0.0
          %431 = vst.msk [vmem:[#allocation3 + $0x10] sm:$0xff] %vm424, 0.0
          %432 = vst.msk [vmem:[#allocation3 + $0x18] sm:$0xff] %vm424, 0.0
          %vm433 = vcmask 64512
          %434 = vst.msk [vmem:[#allocation4] sm:$0xff] %vm433, 0.0
          %435 = vst.msk [vmem:[#allocation4 + $0x8] sm:$0xff] %vm433, 0.0
          %436 = vst.msk [vmem:[#allocation4 + $0x10] sm:$0xff] %vm433, 0.0
          %437 = vst.msk [vmem:[#allocation4 + $0x18] sm:$0xff] %vm433, 0.0
        $region48: #{tpu_custom_call.1} parent=43 // pred_fallthru
          _
        %v438 = vld [vmem:[%s380] sm:$0xf]
        %v439 = vld [vmem:[%s380 + $0x4] sm:$0xf]
        %v440 = vld [vmem:[%s380 + $0x8] sm:$0xf]
        %v441 = vld [vmem:[%s380 + $0xc] sm:$0xf]
        %v442 = vld [vmem:[%s391] sm:$0xf]
        %v443 = vld [vmem:[%s391 + $0x4] sm:$0xf]
        %v444 = vld [vmem:[%s391 + $0x8] sm:$0xf]
        %v445 = vld [vmem:[%s391 + $0xc] sm:$0xf]
        %v446 = vld [vmem:[%s391 + $0x10] sm:$0xf]
        %v447 = vld [vmem:[%s391 + $0x14] sm:$0xf]
        %v448 = vld [vmem:[%s391 + $0x18] sm:$0xf]
        %v449 = vld [vmem:[%s391 + $0x1c] sm:$0xf]
        %v450 = vld [vmem:[%s403] sm:$0xf]
        %v451 = vld [vmem:[%s403 + $0x4] sm:$0xf]
        %v452 = vld [vmem:[%s403 + $0x8] sm:$0xf]
        %v453 = vld [vmem:[%s403 + $0xc] sm:$0xf]
        %v454 = vld [vmem:[%s403 + $0x10] sm:$0xf]
        %v455 = vld [vmem:[%s403 + $0x14] sm:$0xf]
        %v456 = vld [vmem:[%s403 + $0x18] sm:$0xf]
        %v457 = vld [vmem:[%s403 + $0x1c] sm:$0xf]
        %v458 = vld [vmem:[%s411] sm:$0x1]
        %v460 = vlaneseq
        %v461 = vshrl.u32 %v460, 7
        %v462 = vsub.s32 0, %v461
        %v463 = vrot.slane %v458, %v462
        %v467 = vunpack.c.l.b16 %v442
        %v468 = vunpack.c.l.b16 %v443
        %v469 = vpack.c.b16 %v468, %v467
        %vm470 = vcmask 64512
        %v472 = vsel %vm470, %v438, 0
        %v475 = vsel %vm470, %v469, 0
        %477 = vmatprep.subr.bf16.mxu0 0
        %478 = vmatpush1.bf16.xpose.msra.mxu0 0
        %479 = vmatprep.subr.bf16.mxu0 0
        %480 = vmatpush1.bf16.xpose.msra.mxu0 0
        %481 = vmatprep.subr.bf16.mxu0 0
        %482 = vmatpush1.bf16.xpose.msra.mxu0 0
        %483 = vmatprep.subr.bf16.mxu0 0
        %484 = vmatpush1.bf16.xpose.msra.mxu0 0
        %485 = vmatprep.subr.bf16.mxu0 0
        %486 = vmatpush1.bf16.xpose.msra.mxu0 0
        %487 = vmatprep.subr.bf16.mxu0 0
        %488 = vmatpush1.bf16.xpose.msra.mxu0 0
        %489 = vmatprep.subr.bf16.mxu0 0
        %490 = vmatpush1.bf16.xpose.msra.mxu0 0
        %491 = vmatprep.subr.bf16.mxu0 0
        %492 = vmatpush1.bf16.xpose.msra.mxu0 %v475
        %493 = vmatprep.subr.bf16.mxu0 0
        %494 = vmatpush2.bf16.xpose.msra.mxu0 0
        %495 = vmatprep.subr.bf16.mxu0 0
        %496 = vmatpush2.bf16.xpose.msra.mxu0 0
        %497 = vmatprep.subr.bf16.mxu0 0
        %498 = vmatpush2.bf16.xpose.msra.mxu0 0
        %499 = vmatprep.subr.bf16.mxu0 0
        %500 = vmatpush2.bf16.xpose.msra.mxu0 0
        %501 = vmatprep.subr.bf16.mxu0 0
        %502 = vmatpush2.bf16.xpose.msra.mxu0 0
        %503 = vmatprep.subr.bf16.mxu0 0
        %504 = vmatpush2.bf16.xpose.msra.mxu0 0
        %505 = vmatprep.subr.bf16.mxu0 0
        %506 = vmatpush2.bf16.xpose.msra.mxu0 0
        %507 = vmatprep.subr.bf16.mxu0 0
        %508 = vmatpush2.bf16.xpose.msra.mxu0 0
        %509 = vmatprep.mubr.bf16.mxu0 0
        %510 = vmatmul.mubr.bf16.gmra.mxu0 %v472
        %v511 = vpop.f32.mrf.mxu0
        %v512 = vadd.f32 %v463, %v511
        %v513 = vpop.f32.mrf.mxu0
        %v514 = vpop.f32.mrf.mxu0
        %v515 = vpop.f32.mrf.mxu0
        %516 = vdwg.mxu0
        %v519 = vunpack.c.l.b16 %v444
        %v520 = vunpack.c.l.b16 %v445
        %v521 = vpack.c.b16 %v520, %v519
        %v523 = vsel %vm470, %v439, 0
        %v526 = vsel %vm470, %v521, 0
        %528 = vmatprep.subr.bf16.mxu0 0
        %529 = vmatpush1.bf16.xpose.msra.mxu0 0
        %530 = vmatprep.subr.bf16.mxu0 0
        %531 = vmatpush1.bf16.xpose.msra.mxu0 0
        %532 = vmatprep.subr.bf16.mxu0 0
        %533 = vmatpush1.bf16.xpose.msra.mxu0 0
        %534 = vmatprep.subr.bf16.mxu0 0
        %535 = vmatpush1.bf16.xpose.msra.mxu0 0
        %536 = vmatprep.subr.bf16.mxu0 0
        %537 = vmatpush1.bf16.xpose.msra.mxu0 0
        %538 = vmatprep.subr.bf16.mxu0 0
        %539 = vmatpush1.bf16.xpose.msra.mxu0 0
        %540 = vmatprep.subr.bf16.mxu0 0
        %541 = vmatpush1.bf16.xpose.msra.mxu0 0
        %542 = vmatprep.subr.bf16.mxu0 0
        %543 = vmatpush1.bf16.xpose.msra.mxu0 %v526
        %544 = vmatprep.subr.bf16.mxu0 0
        %545 = vmatpush2.bf16.xpose.msra.mxu0 0
        %546 = vmatprep.subr.bf16.mxu0 0
        %547 = vmatpush2.bf16.xpose.msra.mxu0 0
        %548 = vmatprep.subr.bf16.mxu0 0
        %549 = vmatpush2.bf16.xpose.msra.mxu0 0
        %550 = vmatprep.subr.bf16.mxu0 0
        %551 = vmatpush2.bf16.xpose.msra.mxu0 0
        %552 = vmatprep.subr.bf16.mxu0 0
        %553 = vmatpush2.bf16.xpose.msra.mxu0 0
        %554 = vmatprep.subr.bf16.mxu0 0
        %555 = vmatpush2.bf16.xpose.msra.mxu0 0
        %556 = vmatprep.subr.bf16.mxu0 0
        %557 = vmatpush2.bf16.xpose.msra.mxu0 0
        %558 = vmatprep.subr.bf16.mxu0 0
        %559 = vmatpush2.bf16.xpose.msra.mxu0 0
        %560 = vmatprep.mubr.bf16.mxu0 0
        %561 = vmatmul.mubr.bf16.gmra.mxu0 %v523
        %v562 = vpop.f32.mrf.mxu0
        %v563 = vadd.f32 %v463, %v562
        %v564 = vpop.f32.mrf.mxu0
        %v565 = vpop.f32.mrf.mxu0
        %v566 = vpop.f32.mrf.mxu0
        %567 = vdwg.mxu0
        %v570 = vunpack.c.l.b16 %v446
        %v571 = vunpack.c.l.b16 %v447
        %v572 = vpack.c.b16 %v571, %v570
        %v574 = vsel %vm470, %v440, 0
        %v577 = vsel %vm470, %v572, 0
        %579 = vmatprep.subr.bf16.mxu0 0
        %580 = vmatpush1.bf16.xpose.msra.mxu0 0
        %581 = vmatprep.subr.bf16.mxu0 0
        %582 = vmatpush1.bf16.xpose.msra.mxu0 0
        %583 = vmatprep.subr.bf16.mxu0 0
        %584 = vmatpush1.bf16.xpose.msra.mxu0 0
        %585 = vmatprep.subr.bf16.mxu0 0
        %586 = vmatpush1.bf16.xpose.msra.mxu0 0
        %587 = vmatprep.subr.bf16.mxu0 0
        %588 = vmatpush1.bf16.xpose.msra.mxu0 0
        %589 = vmatprep.subr.bf16.mxu0 0
        %590 = vmatpush1.bf16.xpose.msra.mxu0 0
        %591 = vmatprep.subr.bf16.mxu0 0
        %592 = vmatpush1.bf16.xpose.msra.mxu0 0
        %593 = vmatprep.subr.bf16.mxu0 0
        %594 = vmatpush1.bf16.xpose.msra.mxu0 %v577
        %595 = vmatprep.subr.bf16.mxu0 0
        %596 = vmatpush2.bf16.xpose.msra.mxu0 0
        %597 = vmatprep.subr.bf16.mxu0 0
        %598 = vmatpush2.bf16.xpose.msra.mxu0 0
        %599 = vmatprep.subr.bf16.mxu0 0
        %600 = vmatpush2.bf16.xpose.msra.mxu0 0
        %601 = vmatprep.subr.bf16.mxu0 0
        %602 = vmatpush2.bf16.xpose.msra.mxu0 0
        %603 = vmatprep.subr.bf16.mxu0 0
        %604 = vmatpush2.bf16.xpose.msra.mxu0 0
        %605 = vmatprep.subr.bf16.mxu0 0
        %606 = vmatpush2.bf16.xpose.msra.mxu0 0
        %607 = vmatprep.subr.bf16.mxu0 0
        %608 = vmatpush2.bf16.xpose.msra.mxu0 0
        %609 = vmatprep.subr.bf16.mxu0 0
        %610 = vmatpush2.bf16.xpose.msra.mxu0 0
        %611 = vmatprep.mubr.bf16.mxu0 0
        %612 = vmatmul.mubr.bf16.gmra.mxu0 %v574
        %v613 = vpop.f32.mrf.mxu0
        %v614 = vadd.f32 %v463, %v613
        %v615 = vpop.f32.mrf.mxu0
        %v616 = vpop.f32.mrf.mxu0
        %v617 = vpop.f32.mrf.mxu0
        %618 = vdwg.mxu0
        %v621 = vunpack.c.l.b16 %v448
        %v622 = vunpack.c.l.b16 %v449
        %v623 = vpack.c.b16 %v622, %v621
        %v625 = vsel %vm470, %v441, 0
        %v628 = vsel %vm470, %v623, 0
        %630 = vmatprep.subr.bf16.mxu0 0
        %631 = vmatpush1.bf16.xpose.msra.mxu0 0
        %632 = vmatprep.subr.bf16.mxu0 0
        %633 = vmatpush1.bf16.xpose.msra.mxu0 0
        %634 = vmatprep.subr.bf16.mxu0 0
        %635 = vmatpush1.bf16.xpose.msra.mxu0 0
        %636 = vmatprep.subr.bf16.mxu0 0
        %637 = vmatpush1.bf16.xpose.msra.mxu0 0
        %638 = vmatprep.subr.bf16.mxu0 0
        %639 = vmatpush1.bf16.xpose.msra.mxu0 0
        %640 = vmatprep.subr.bf16.mxu0 0
        %641 = vmatpush1.bf16.xpose.msra.mxu0 0
        %642 = vmatprep.subr.bf16.mxu0 0
        %643 = vmatpush1.bf16.xpose.msra.mxu0 0
        %644 = vmatprep.subr.bf16.mxu0 0
        %645 = vmatpush1.bf16.xpose.msra.mxu0 %v628
        %646 = vmatprep.subr.bf16.mxu0 0
        %647 = vmatpush2.bf16.xpose.msra.mxu0 0
        %648 = vmatprep.subr.bf16.mxu0 0
        %649 = vmatpush2.bf16.xpose.msra.mxu0 0
        %650 = vmatprep.subr.bf16.mxu0 0
        %651 = vmatpush2.bf16.xpose.msra.mxu0 0
        %652 = vmatprep.subr.bf16.mxu0 0
        %653 = vmatpush2.bf16.xpose.msra.mxu0 0
        %654 = vmatprep.subr.bf16.mxu0 0
        %655 = vmatpush2.bf16.xpose.msra.mxu0 0
        %656 = vmatprep.subr.bf16.mxu0 0
        %657 = vmatpush2.bf16.xpose.msra.mxu0 0
        %658 = vmatprep.subr.bf16.mxu0 0
        %659 = vmatpush2.bf16.xpose.msra.mxu0 0
        %660 = vmatprep.subr.bf16.mxu0 0
        %661 = vmatpush2.bf16.xpose.msra.mxu0 0
        %662 = vmatprep.mubr.bf16.mxu0 0
        %663 = vmatmul.mubr.bf16.gmra.mxu0 %v625
        %v664 = vpop.f32.mrf.mxu0
        %v665 = vadd.f32 %v463, %v664
        %v666 = vpop.f32.mrf.mxu0
        %v667 = vpop.f32.mrf.mxu0
        %v668 = vpop.f32.mrf.mxu0
        %669 = vdwg.mxu0
        %v670 = vld [vmem:[#allocation2] sm:$0xff]
        %v671 = vld [vmem:[#allocation2 + $0x8] sm:$0xff]
        %v672 = vld [vmem:[#allocation2 + $0x10] sm:$0xff]
        %v673 = vld [vmem:[#allocation2 + $0x18] sm:$0xff]
        %vm674 = vcmask 130048
        %v675 = vsel %vm674, %v512, -inf
        %676 = vmax.xlane.f32.xlu0 %v675
        %v677 = vpop.xlane.xlu0 %676
        %v678 = vsel %vm674, %v563, -inf
        %679 = vmax.xlane.f32.xlu0 %v678
        %v680 = vpop.xlane.xlu0 %679
        %v681 = vsel %vm674, %v614, -inf
        %682 = vmax.xlane.f32.xlu0 %v681
        %v683 = vpop.xlane.xlu0 %682
        %v684 = vsel %vm674, %v665, -inf
        %685 = vmax.xlane.f32.xlu0 %v684
        %v686 = vpop.xlane.xlu0 %685
        %v687 = vmax.f32 %v670, %v677
        %v688 = vmax.f32 %v671, %v680
        %v689 = vmax.f32 %v672, %v683
        %v690 = vmax.f32 %v673, %v686
        %v691 = vsub.f32 %v670, %v687
        %v692 = vsub.f32 %v671, %v688
        %v693 = vsub.f32 %v672, %v689
        %v694 = vsub.f32 %v673, %v690
        %v695 = vmul.f32 %v691, 1.442695
        %v696 = vpow.pop %v695
        %v697 = vmul.f32 %v692, 1.442695
        %v698 = vpow.pop %v697
        %v699 = vmul.f32 %v693, 1.442695
        %v700 = vpow.pop %v699
        %v701 = vmul.f32 %v694, 1.442695
        %v702 = vpow.pop %v701
        %704 = vset.pattern.permute.xlu0 0
        %705 = vperm.xlu0 %704, %v687
        %v706 = vpop.permute.xlu0 %705
        %709 = vset.pattern.permute.xlu0 0
        %710 = vperm.xlu0 %709, %v688
        %v711 = vpop.permute.xlu0 %710
        %714 = vset.pattern.permute.xlu0 0
        %715 = vperm.xlu0 %714, %v689
        %v716 = vpop.permute.xlu0 %715
        %719 = vset.pattern.permute.xlu0 0
        %720 = vperm.xlu0 %719, %v690
        %v721 = vpop.permute.xlu0 %720
        %v723 = vsub.f32 %v512, %v706
        %v724 = vsub.f32 %v563, %v711
        %v725 = vsub.f32 %v614, %v716
        %v726 = vsub.f32 %v665, %v721
        %v727 = vmul.f32 %v723, 1.442695
        %v728 = vpow.pop %v727
        %v729 = vmul.f32 %v724, 1.442695
        %v730 = vpow.pop %v729
        %v731 = vmul.f32 %v725, 1.442695
        %v732 = vpow.pop %v731
        %v733 = vmul.f32 %v726, 1.442695
        %v734 = vpow.pop %v733
        %v735 = vld [vmem:[#allocation3] sm:$0xff]
        %v736 = vld [vmem:[#allocation3 + $0x8] sm:$0xff]
        %v737 = vld [vmem:[#allocation3 + $0x10] sm:$0xff]
        %v738 = vld [vmem:[#allocation3 + $0x18] sm:$0xff]
        %v739 = vmul.f32 %v696, %v735
        %v740 = vmul.f32 %v698, %v736
        %v741 = vmul.f32 %v700, %v737
        %v742 = vmul.f32 %v702, %v738
        %v743 = vsel %vm674, %v728, 0.0
        %744 = vadd.xlane.f32.xlu0 %v743
        %v745 = vpop.xlane.xlu0 %744
        %v746 = vsel %vm674, %v730, 0.0
        %747 = vadd.xlane.f32.xlu0 %v746
        %v748 = vpop.xlane.xlu0 %747
        %v749 = vsel %vm674, %v732, 0.0
        %750 = vadd.xlane.f32.xlu0 %v749
        %v751 = vpop.xlane.xlu0 %750
        %v752 = vsel %vm674, %v734, 0.0
        %753 = vadd.xlane.f32.xlu0 %v752
        %v754 = vpop.xlane.xlu0 %753
        %v755 = vadd.f32 %v739, %v745
        %v756 = vadd.f32 %v740, %v748
        %v757 = vadd.f32 %v741, %v751
        %v758 = vadd.f32 %v742, %v754
        %vm759 = vcmask 7168
        %760 = vst.msk [vmem:[#allocation3] sm:$0xff] %vm759, %v755
        %761 = vst.msk [vmem:[#allocation3 + $0x8] sm:$0xff] %vm759, %v756
        %762 = vst.msk [vmem:[#allocation3 + $0x10] sm:$0xff] %vm759, %v757
        %763 = vst.msk [vmem:[#allocation3 + $0x18] sm:$0xff] %vm759, %v758
        %v764 = vld [vmem:[#allocation4] sm:$0xff]
        %v765 = vld [vmem:[#allocation4 + $0x8] sm:$0xff]
        %v766 = vld [vmem:[#allocation4 + $0x10] sm:$0xff]
        %v767 = vld [vmem:[#allocation4 + $0x18] sm:$0xff]
        %769 = vset.pattern.permute.xlu0 0
        %770 = vperm.xlu0 %769, %v696
        %v771 = vpop.permute.xlu0 %770
        %774 = vset.pattern.permute.xlu0 0
        %775 = vperm.xlu0 %774, %v698
        %v776 = vpop.permute.xlu0 %775
        %779 = vset.pattern.permute.xlu0 0
        %780 = vperm.xlu0 %779, %v700
        %v781 = vpop.permute.xlu0 %780
        %784 = vset.pattern.permute.xlu0 0
        %785 = vperm.xlu0 %784, %v702
        %v786 = vpop.permute.xlu0 %785
        %v788 = vmul.f32 %v771, %v764
        %v789 = vmul.f32 %v776, %v765
        %v790 = vmul.f32 %v781, %v766
        %v791 = vmul.f32 %v786, %v767
        %v792 = vpack.c.bf16 %v728, %v728
        %v793 = vpack.c.bf16 %v730, %v730
        %v794 = vpack.c.bf16 %v732, %v732
        %v795 = vpack.c.bf16 %v734, %v734
        %v798 = vunpack.c.l.b16 %v450
        %v799 = vunpack.c.l.b16 %v451
        %v800 = vpack.c.b16 %v799, %v798
        %v803 = vsel %vm674, %v792, 0
        %805 = vmatprep.subr.bf16.mxu0 0
        %806 = vmatpush1.bf16.msra.mxu0 0
        %807 = vmatprep.subr.bf16.mxu0 0
        %808 = vmatpush1.bf16.msra.mxu0 0
        %809 = vmatprep.subr.bf16.mxu0 0
        %810 = vmatpush1.bf16.msra.mxu0 0
        %811 = vmatprep.subr.bf16.mxu0 0
        %812 = vmatpush1.bf16.msra.mxu0 0
        %813 = vmatprep.subr.bf16.mxu0 0
        %814 = vmatpush1.bf16.msra.mxu0 0
        %815 = vmatprep.subr.bf16.mxu0 0
        %816 = vmatpush1.bf16.msra.mxu0 0
        %817 = vmatprep.subr.bf16.mxu0 0
        %818 = vmatpush1.bf16.msra.mxu0 0
        %819 = vmatprep.subr.bf16.mxu0 0
        %820 = vmatpush1.bf16.msra.mxu0 %v800
        %821 = vmatprep.subr.bf16.mxu0 0
        %822 = vmatpush2.bf16.msra.mxu0 0
        %823 = vmatprep.subr.bf16.mxu0 0
        %824 = vmatpush2.bf16.msra.mxu0 0
        %825 = vmatprep.subr.bf16.mxu0 0
        %826 = vmatpush2.bf16.msra.mxu0 0
        %827 = vmatprep.subr.bf16.mxu0 0
        %828 = vmatpush2.bf16.msra.mxu0 0
        %829 = vmatprep.subr.bf16.mxu0 0
        %830 = vmatpush2.bf16.msra.mxu0 0
        %831 = vmatprep.subr.bf16.mxu0 0
        %832 = vmatpush2.bf16.msra.mxu0 0
        %833 = vmatprep.subr.bf16.mxu0 0
        %834 = vmatpush2.bf16.msra.mxu0 0
        %835 = vmatprep.subr.bf16.mxu0 0
        %836 = vmatpush2.bf16.msra.mxu0 0
        %837 = vmatprep.mubr.bf16.mxu0 0
        %838 = vmatmul.mubr.bf16.gmra.mxu0 %v803
        %v839 = vpop.f32.mrf.mxu0
        %v840 = vadd.f32 0.0, %v839
        %v841 = vpop.f32.mrf.mxu0
        %v842 = vpop.f32.mrf.mxu0
        %v843 = vpop.f32.mrf.mxu0
        %844 = vdwg.mxu0
        %v847 = vunpack.c.l.b16 %v452
        %v848 = vunpack.c.l.b16 %v453
        %v849 = vpack.c.b16 %v848, %v847
        %v852 = vsel %vm674, %v793, 0
        %854 = vmatprep.subr.bf16.mxu0 0
        %855 = vmatpush1.bf16.msra.mxu0 0
        %856 = vmatprep.subr.bf16.mxu0 0
        %857 = vmatpush1.bf16.msra.mxu0 0
        %858 = vmatprep.subr.bf16.mxu0 0
        %859 = vmatpush1.bf16.msra.mxu0 0
        %860 = vmatprep.subr.bf16.mxu0 0
        %861 = vmatpush1.bf16.msra.mxu0 0
        %862 = vmatprep.subr.bf16.mxu0 0
        %863 = vmatpush1.bf16.msra.mxu0 0
        %864 = vmatprep.subr.bf16.mxu0 0
        %865 = vmatpush1.bf16.msra.mxu0 0
        %866 = vmatprep.subr.bf16.mxu0 0
        %867 = vmatpush1.bf16.msra.mxu0 0
        %868 = vmatprep.subr.bf16.mxu0 0
        %869 = vmatpush1.bf16.msra.mxu0 %v849
        %870 = vmatprep.subr.bf16.mxu0 0
        %871 = vmatpush2.bf16.msra.mxu0 0
        %872 = vmatprep.subr.bf16.mxu0 0
        %873 = vmatpush2.bf16.msra.mxu0 0
        %874 = vmatprep.subr.bf16.mxu0 0
        %875 = vmatpush2.bf16.msra.mxu0 0
        %876 = vmatprep.subr.bf16.mxu0 0
        %877 = vmatpush2.bf16.msra.mxu0 0
        %878 = vmatprep.subr.bf16.mxu0 0
        %879 = vmatpush2.bf16.msra.mxu0 0
        %880 = vmatprep.subr.bf16.mxu0 0
        %881 = vmatpush2.bf16.msra.mxu0 0
        %882 = vmatprep.subr.bf16.mxu0 0
        %883 = vmatpush2.bf16.msra.mxu0 0
        %884 = vmatprep.subr.bf16.mxu0 0
        %885 = vmatpush2.bf16.msra.mxu0 0
        %886 = vmatprep.mubr.bf16.mxu0 0
        %887 = vmatmul.mubr.bf16.gmra.mxu0 %v852
        %v888 = vpop.f32.mrf.mxu0
        %v889 = vadd.f32 0.0, %v888
        %v890 = vpop.f32.mrf.mxu0
        %v891 = vpop.f32.mrf.mxu0
        %v892 = vpop.f32.mrf.mxu0
        %893 = vdwg.mxu0
        %v896 = vunpack.c.l.b16 %v454
        %v897 = vunpack.c.l.b16 %v455
        %v898 = vpack.c.b16 %v897, %v896
        %v901 = vsel %vm674, %v794, 0
        %903 = vmatprep.subr.bf16.mxu0 0
        %904 = vmatpush1.bf16.msra.mxu0 0
        %905 = vmatprep.subr.bf16.mxu0 0
        %906 = vmatpush1.bf16.msra.mxu0 0
        %907 = vmatprep.subr.bf16.mxu0 0
        %908 = vmatpush1.bf16.msra.mxu0 0
        %909 = vmatprep.subr.bf16.mxu0 0
        %910 = vmatpush1.bf16.msra.mxu0 0
        %911 = vmatprep.subr.bf16.mxu0 0
        %912 = vmatpush1.bf16.msra.mxu0 0
        %913 = vmatprep.subr.bf16.mxu0 0
        %914 = vmatpush1.bf16.msra.mxu0 0
        %915 = vmatprep.subr.bf16.mxu0 0
        %916 = vmatpush1.bf16.msra.mxu0 0
        %917 = vmatprep.subr.bf16.mxu0 0
        %918 = vmatpush1.bf16.msra.mxu0 %v898
        %919 = vmatprep.subr.bf16.mxu0 0
        %920 = vmatpush2.bf16.msra.mxu0 0
        %921 = vmatprep.subr.bf16.mxu0 0
        %922 = vmatpush2.bf16.msra.mxu0 0
        %923 = vmatprep.subr.bf16.mxu0 0
        %924 = vmatpush2.bf16.msra.mxu0 0
        %925 = vmatprep.subr.bf16.mxu0 0
        %926 = vmatpush2.bf16.msra.mxu0 0
        %927 = vmatprep.subr.bf16.mxu0 0
        %928 = vmatpush2.bf16.msra.mxu0 0
        %929 = vmatprep.subr.bf16.mxu0 0
        %930 = vmatpush2.bf16.msra.mxu0 0
        %931 = vmatprep.subr.bf16.mxu0 0
        %932 = vmatpush2.bf16.msra.mxu0 0
        %933 = vmatprep.subr.bf16.mxu0 0
        %934 = vmatpush2.bf16.msra.mxu0 0
        %935 = vmatprep.mubr.bf16.mxu0 0
        %936 = vmatmul.mubr.bf16.gmra.mxu0 %v901
        %v937 = vpop.f32.mrf.mxu0
        %v938 = vadd.f32 0.0, %v937
        %v939 = vpop.f32.mrf.mxu0
        %v940 = vpop.f32.mrf.mxu0
        %v941 = vpop.f32.mrf.mxu0
        %942 = vdwg.mxu0
        %v945 = vunpack.c.l.b16 %v456
        %v946 = vunpack.c.l.b16 %v457
        %v947 = vpack.c.b16 %v946, %v945
        %v950 = vsel %vm674, %v795, 0
        %952 = vmatprep.subr.bf16.mxu0 0
        %953 = vmatpush1.bf16.msra.mxu0 0
        %954 = vmatprep.subr.bf16.mxu0 0
        %955 = vmatpush1.bf16.msra.mxu0 0
        %956 = vmatprep.subr.bf16.mxu0 0
        %957 = vmatpush1.bf16.msra.mxu0 0
        %958 = vmatprep.subr.bf16.mxu0 0
        %959 = vmatpush1.bf16.msra.mxu0 0
        %960 = vmatprep.subr.bf16.mxu0 0
        %961 = vmatpush1.bf16.msra.mxu0 0
        %962 = vmatprep.subr.bf16.mxu0 0
        %963 = vmatpush1.bf16.msra.mxu0 0
        %964 = vmatprep.subr.bf16.mxu0 0
        %965 = vmatpush1.bf16.msra.mxu0 0
        %966 = vmatprep.subr.bf16.mxu0 0
        %967 = vmatpush1.bf16.msra.mxu0 %v947
        %968 = vmatprep.subr.bf16.mxu0 0
        %969 = vmatpush2.bf16.msra.mxu0 0
        %970 = vmatprep.subr.bf16.mxu0 0
        %971 = vmatpush2.bf16.msra.mxu0 0
        %972 = vmatprep.subr.bf16.mxu0 0
        %973 = vmatpush2.bf16.msra.mxu0 0
        %974 = vmatprep.subr.bf16.mxu0 0
        %975 = vmatpush2.bf16.msra.mxu0 0
        %976 = vmatprep.subr.bf16.mxu0 0
        %977 = vmatpush2.bf16.msra.mxu0 0
        %978 = vmatprep.subr.bf16.mxu0 0
        %979 = vmatpush2.bf16.msra.mxu0 0
        %980 = vmatprep.subr.bf16.mxu0 0
        %981 = vmatpush2.bf16.msra.mxu0 0
        %982 = vmatprep.subr.bf16.mxu0 0
        %983 = vmatpush2.bf16.msra.mxu0 0
        %984 = vmatprep.mubr.bf16.mxu0 0
        %985 = vmatmul.mubr.bf16.gmra.mxu0 %v950
        %v986 = vpop.f32.mrf.mxu0
        %v987 = vadd.f32 0.0, %v986
        %v988 = vpop.f32.mrf.mxu0
        %v989 = vpop.f32.mrf.mxu0
        %v990 = vpop.f32.mrf.mxu0
        %991 = vdwg.mxu0
        %v992 = vadd.f32 %v788, %v840
        %v993 = vadd.f32 %v789, %v889
        %v994 = vadd.f32 %v790, %v938
        %v995 = vadd.f32 %v791, %v987
        %996 = vst.msk [vmem:[#allocation4] sm:$0xff] %vm470, %v992
        %997 = vst.msk [vmem:[#allocation4 + $0x8] sm:$0xff] %vm470, %v993
        %998 = vst.msk [vmem:[#allocation4 + $0x10] sm:$0xff] %vm470, %v994
        %999 = vst.msk [vmem:[#allocation4 + $0x18] sm:$0xff] %vm470, %v995
        %1000 = vst.msk [vmem:[#allocation2] sm:$0xff] %vm759, %v687
        %1001 = vst.msk [vmem:[#allocation2 + $0x8] sm:$0xff] %vm759, %v688
        %1002 = vst.msk [vmem:[#allocation2 + $0x10] sm:$0xff] %vm759, %v689
        %1003 = vst.msk [vmem:[#allocation2 + $0x18] sm:$0xff] %vm759, %v690
        // Predicated region
        $region49: #{tpu_custom_call.1} parent=43 // pred_check
          %p1004 = pneg %p420
        $region50: #{tpu_custom_call.1} parent=43 // pred_check_branch
          %1006 = sbr.rel (%p1004) target = $region52
        $region51: #{tpu_custom_call.1} parent=43 // pred_region
          %v1007 = vld [vmem:[#allocation3] sm:$0xff]
          %v1008 = vld [vmem:[#allocation3 + $0x8] sm:$0xff]
          %v1009 = vld [vmem:[#allocation3 + $0x10] sm:$0xff]
          %v1010 = vld [vmem:[#allocation3 + $0x18] sm:$0xff]
          %v1011 = vrcp.pop %v1007
          %v1012 = vrcp.pop %v1008
          %v1013 = vrcp.pop %v1009
          %v1014 = vrcp.pop %v1010
          %v1015 = vld [vmem:[#allocation4] sm:$0xff]
          %v1016 = vld [vmem:[#allocation4 + $0x8] sm:$0xff]
          %v1017 = vld [vmem:[#allocation4 + $0x10] sm:$0xff]
          %v1018 = vld [vmem:[#allocation4 + $0x18] sm:$0xff]
          %1020 = vset.pattern.permute.xlu0 0
          %1021 = vperm.xlu0 %1020, %v1011
          %v1022 = vpop.permute.xlu0 %1021
          %1025 = vset.pattern.permute.xlu0 0
          %1026 = vperm.xlu0 %1025, %v1012
          %v1027 = vpop.permute.xlu0 %1026
          %1030 = vset.pattern.permute.xlu0 0
          %1031 = vperm.xlu0 %1030, %v1013
          %v1032 = vpop.permute.xlu0 %1031
          %1035 = vset.pattern.permute.xlu0 0
          %1036 = vperm.xlu0 %1035, %v1014
          %v1037 = vpop.permute.xlu0 %1036
          %v1039 = vmul.f32 %v1015, %v1022
          %v1040 = vmul.f32 %v1016, %v1027
          %v1041 = vmul.f32 %v1017, %v1032
          %v1042 = vmul.f32 %v1018, %v1037
          %v1043 = vpack.c.bf16 %v1039, %v1039
          %v1045 = vunpack.c.l.s4 1983009808
          %v1046 = vunpack.c.0.s8 %v1045
          %v1047 = vlaneseq
          %v1048 = vshrl.u32 %v1047, 7
          %v1049 = vsub.s32 %v1046, %v1048
          %v1050 = vrot.slane %v1043, %v1049
          %v1051 = vpack.c.bf16 %v1041, %v1041
          %v1053 = vunpack.c.l.s4 1983009808
          %v1054 = vunpack.c.0.s8 %v1053
          %v1055 = vlaneseq
          %v1056 = vshrl.u32 %v1055, 7
          %v1057 = vsub.s32 %v1054, %v1056
          %v1058 = vrot.slane %v1051, %v1057
          %v1059 = vcombine.low %v1050, %v1058
          %v1060 = vcombine.high %v1050, %v1058
          %v1062 = vunpack.c.l.s4 1934713408
          %v1063 = vunpack.c.0.s8 %v1062
          %v1064 = vlaneseq
          %v1065 = vshrl.u32 %v1064, 7
          %v1066 = vsub.s32 %v1063, %v1065
          %v1067 = vrot.slane %v1059, %v1066
          %v1069 = vunpack.c.l.s4 1934713408
          %v1070 = vunpack.c.0.s8 %v1069
          %v1071 = vlaneseq
          %v1072 = vshrl.u32 %v1071, 7
          %v1073 = vsub.s32 %v1070, %v1072
          %v1074 = vrot.slane %v1060, %v1073
          %v1075 = vcombine.high %v1067, 0
          %v1076 = vcombine.high %v1074, 0
          %v1077 = vpack.c.bf16 %v1040, %v1040
          %v1079 = vunpack.c.l.s4 1983009808
          %v1080 = vunpack.c.0.s8 %v1079
          %v1081 = vlaneseq
          %v1082 = vshrl.u32 %v1081, 7
          %v1083 = vsub.s32 %v1080, %v1082
          %v1084 = vrot.slane %v1077, %v1083
          %v1085 = vpack.c.bf16 %v1042, %v1042
          %v1087 = vunpack.c.l.s4 1983009808
          %v1088 = vunpack.c.0.s8 %v1087
          %v1089 = vlaneseq
          %v1090 = vshrl.u32 %v1089, 7
          %v1091 = vsub.s32 %v1088, %v1090
          %v1092 = vrot.slane %v1085, %v1091
          %v1093 = vcombine.low %v1084, %v1092
          %v1094 = vcombine.high %v1084, %v1092
          %v1096 = vunpack.c.l.s4 1934713408
          %v1097 = vunpack.c.0.s8 %v1096
          %v1098 = vlaneseq
          %v1099 = vshrl.u32 %v1098, 7
          %v1100 = vsub.s32 %v1097, %v1099
          %v1101 = vrot.slane %v1093, %v1100
          %v1103 = vunpack.c.l.s4 1934713408
          %v1104 = vunpack.c.0.s8 %v1103
          %v1105 = vlaneseq
          %v1106 = vshrl.u32 %v1105, 7
          %v1107 = vsub.s32 %v1104, %v1106
          %v1108 = vrot.slane %v1094, %v1107
          %v1109 = vcombine.high %v1101, 0
          %v1110 = vcombine.high %v1108, 0
          %v1113 = vpack.i.b16 %v1101, %v1067
          %v1115 = vshrl.u32 %v1067, 16
          %v1116 = vshrl.u32 %v1101, 16
          %v1117 = vpack.i.b16 %v1116, %v1115
          %v1121 = vpack.i.b16 %v1109, %v1075
          %v1123 = vshrl.u32 %v1075, 16
          %v1124 = vshrl.u32 %v1109, 16
          %v1125 = vpack.i.b16 %v1124, %v1123
          %v1129 = vpack.i.b16 %v1108, %v1074
          %v1131 = vshrl.u32 %v1074, 16
          %v1132 = vshrl.u32 %v1108, 16
          %v1133 = vpack.i.b16 %v1132, %v1131
          %v1137 = vpack.i.b16 %v1110, %v1076
          %v1139 = vshrl.u32 %v1076, 16
          %v1140 = vshrl.u32 %v1110, 16
          %v1141 = vpack.i.b16 %v1140, %v1139
          %v1143 = vcombine.low %v1113, %v1129
          %v1145 = vunpack.c.l.s4 1983009808
          %v1146 = vunpack.c.0.s8 %v1145
          %v1147 = vlaneseq
          %v1148 = vshrl.u32 %v1147, 7
          %v1149 = vsub.s32 %v1146, %v1148
          %v1150 = vrot.slane %v1143, %v1149
          %v1151 = vcombine.low %v1121, %v1137
          %v1153 = vunpack.c.l.s4 1983009808
          %v1154 = vunpack.c.0.s8 %v1153
          %v1155 = vlaneseq
          %v1156 = vshrl.u32 %v1155, 7
          %v1157 = vsub.s32 %v1154, %v1156
          %v1158 = vrot.slane %v1151, %v1157
          %v1159 = vcombine.low %v1150, %v1158
          %v1161 = vunpack.c.l.s4 1934713408
          %v1162 = vunpack.c.0.s8 %v1161
          %v1163 = vlaneseq
          %v1164 = vshrl.u32 %v1163, 7
          %v1165 = vsub.s32 %v1162, %v1164
          %v1166 = vrot.slane %v1159, %v1165
          %v1167 = vcombine.high %v1166, 0
          %v1168 = vcombine.low %v1117, %v1133
          %v1170 = vunpack.c.l.s4 1983009808
          %v1171 = vunpack.c.0.s8 %v1170
          %v1172 = vlaneseq
          %v1173 = vshrl.u32 %v1172, 7
          %v1174 = vsub.s32 %v1171, %v1173
          %v1175 = vrot.slane %v1168, %v1174
          %v1176 = vcombine.low %v1125, %v1141
          %v1178 = vunpack.c.l.s4 1983009808
          %v1179 = vunpack.c.0.s8 %v1178
          %v1180 = vlaneseq
          %v1181 = vshrl.u32 %v1180, 7
          %v1182 = vsub.s32 %v1179, %v1181
          %v1183 = vrot.slane %v1176, %v1182
          %v1184 = vcombine.low %v1175, %v1183
          %v1186 = vunpack.c.l.s4 1934713408
          %v1187 = vunpack.c.0.s8 %v1186
          %v1188 = vlaneseq
          %v1189 = vshrl.u32 %v1188, 7
          %v1190 = vsub.s32 %v1187, %v1189
          %v1191 = vrot.slane %v1184, %v1190
          %v1192 = vcombine.high %v1191, 0
          %v1195 = vpack.i.b16 %v1191, %v1166
          %v1196 = vshrl.u32 %v1166, 16
          %v1197 = vshrl.u32 %v1191, 16
          %v1198 = vpack.i.b16 %v1197, %v1196
          %v1201 = vpack.i.b16 %v1192, %v1167
          %v1202 = vshrl.u32 %v1167, 16
          %v1203 = vshrl.u32 %v1192, 16
          %v1204 = vpack.i.b16 %v1203, %v1202
          %1205 = vrot.lane.b32.xlu0 %v1198, 8
          %v1206 = vpop.permute.xlu0 %1205
          %1207 = vrot.lane.b32.xlu0 %v1201, 16
          %v1208 = vpop.permute.xlu0 %1207
          %1209 = vrot.lane.b32.xlu0 %v1204, 24
          %v1210 = vpop.permute.xlu0 %1209
          %v1213 = vsel %vm470, %v1195, %v1206
          %v1215 = vsel %vm674, %v1213, %v1208
          %vm1216 = vcmask 195584
          %v1218 = vsel %vm1216, %v1215, %v1210
          %v1219 = vld [vmem:[%s5] sm:$0xf]
          %v1220 = vld [vmem:[%s5 + $0x4] sm:$0xf]
          %v1221 = vld [vmem:[%s5 + $0x8] sm:$0xf]
          %v1222 = vld [vmem:[%s5 + $0xc] sm:$0xf]
          %v1227 = vunpack.c.l.b16 %v1219
          %v1228 = vunpack.c.l.b16 %v1220
          %v1229 = vunpack.c.l.b16 %v1221
          %v1230 = vunpack.c.l.b16 %v1222
          %v1231 = vpack.c.b16 %v1228, %v1227
          %v1232 = vpack.c.b16 %v1230, %v1229
          %vm1235 = vcmask 261120
          %v1236 = vsel %vm1235, %v1218, 0
          %1238 = vmatprep.subr.bf16.mxu0 0
          %1239 = vmatpush1.bf16.msra.mxu0 0
          %1240 = vmatprep.subr.bf16.mxu0 0
          %1241 = vmatpush1.bf16.msra.mxu0 0
          %1242 = vmatprep.subr.bf16.mxu0 0
          %1243 = vmatpush1.bf16.msra.mxu0 0
          %1244 = vmatprep.subr.bf16.mxu0 0
          %1245 = vmatpush1.bf16.msra.mxu0 0
          %1246 = vmatprep.subr.bf16.mxu0 0
          %1247 = vmatpush1.bf16.msra.mxu0 0
          %1248 = vmatprep.subr.bf16.mxu0 0
          %1249 = vmatpush1.bf16.msra.mxu0 0
          %1250 = vmatprep.subr.bf16.mxu0 0
          %1251 = vmatpush1.bf16.msra.mxu0 %v1232
          %1252 = vmatprep.subr.bf16.mxu0 0
          %1253 = vmatpush1.bf16.msra.mxu0 %v1231
          %1254 = vmatprep.subr.bf16.mxu0 0
          %1255 = vmatpush2.bf16.msra.mxu0 0
          %1256 = vmatprep.subr.bf16.mxu0 0
          %1257 = vmatpush2.bf16.msra.mxu0 0
          %1258 = vmatprep.subr.bf16.mxu0 0
          %1259 = vmatpush2.bf16.msra.mxu0 0
          %1260 = vmatprep.subr.bf16.mxu0 0
          %1261 = vmatpush2.bf16.msra.mxu0 0
          %1262 = vmatprep.subr.bf16.mxu0 0
          %1263 = vmatpush2.bf16.msra.mxu0 0
          %1264 = vmatprep.subr.bf16.mxu0 0
          %1265 = vmatpush2.bf16.msra.mxu0 0
          %1266 = vmatprep.subr.bf16.mxu0 0
          %1267 = vmatpush2.bf16.msra.mxu0 0
          %1268 = vmatprep.subr.bf16.mxu0 0
          %1269 = vmatpush2.bf16.msra.mxu0 0
          %1270 = vmatprep.mubr.bf16.mxu0 0
          %1271 = vmatmul.mubr.bf16.gmra.mxu0 %v1236
          %v1272 = vpop.f32.mrf.mxu0
          %v1273 = vadd.f32 0.0, %v1272
          %v1274 = vpop.f32.mrf.mxu0
          %v1275 = vpop.f32.mrf.mxu0
          %v1276 = vpop.f32.mrf.mxu0
          %1277 = vdwg.mxu0
          %v1278 = vld [vmem:[%s418] sm:$0xff]
          %vm1279 = vcmp.gt.f32.partialorder %v1278, 0.5
          %v1280 = vsel %vm1279, 1, 0
          %1281 = vset.pattern.permute.xlu0 0
          %1282 = vperm.xlu0 %1281, %v1280
          %v1283 = vpop.permute.xlu0 %1282
          %vm1284 = vcmp.eq.s32.totalorder %v1283, 1
          %v1285 = vsel %vm1284, 0.0, %v1273
          %1286 = vst.msk [vmem:[%s372] sm:$0xff] %vm1235, %v1285
        $region52: #{tpu_custom_call.1} parent=43 // pred_fallthru
          _
        %s1287 = sand.u32 %s210, 1
        %s1288 = scalar_lea.sflag [#allocation6], %s1287
        %s1289 = sand.u32 %s210, 1
        %s1290 = smul.addr %s1289, 8
        %s1291 = scalar_lea.vmem [#allocation5], %s1290
        // Predicated region
        $region53: #{tpu_custom_call.1} parent=43 // pred_check
          %p1292 = pneg %p220
        $region54: #{tpu_custom_call.1} parent=43 // pred_check_branch
          %1294 = sbr.rel (%p1292) target = $region56
        $region55: #{tpu_custom_call.1} parent=43 // pred_region
          %s1296 = ssub.s32 128, 128
          %1297 = vsyncadd %s1288, %s1296
          %s1298 = sadd.s32 %s26, %s25
          %s1299 = smul.addr %s1298, 128
          %s1300 = scalar_lea.hbm %s6, %s1299
          %s1302 = sshll.u32 %s1291, 4
          %s1303 = int_to_ptr.vmem [resolvable:$true] %s1302
          %1305 = dma.vmem_to_hbm [thread:$0]  %s1303, 128, %s1300, %s1288
        $region56: #{tpu_custom_call.1} parent=43 // pred_fallthru
          _
      $region44: #{tpu_custom_call.1} parent=5 // pred_fallthru
        _
      %p1306 = scmp.le.s32.totalorder 2, %s15
      // Predicated region
      $region57: #{tpu_custom_call.1} parent=5 // pred_check
        %p1307 = pneg %p1306
      $region58: #{tpu_custom_call.1} parent=5 // pred_check_branch
        %1309 = sbr.rel (%p1307) target = $region60
      $region59: #{tpu_custom_call.1} parent=5 // pred_region
        %s1310 = ssub.s32 %s15, 2
        // Predicated region
        $region61: #{tpu_custom_call.1} parent=59 // pred_check
          %p1311 = pneg %p226
        $region62: #{tpu_custom_call.1} parent=59 // pred_check_branch
          %1313 = sbr.rel (%p1311) target = $region64
        $region63: #{tpu_custom_call.1} parent=59 // pred_region
          %s1314 = sand.u32 %s211, 1
          %s1315 = scalar_lea.sflag [#allocation6], %s1314
          %s1316 = sand.u32 %s211, 1
          %s1317 = smul.addr %s1316, 8
          %s1318 = scalar_lea.vmem [#allocation5], %s1317
          %1319 = dma.done %s1315, 128
        $region64: #{tpu_custom_call.1} parent=59 // pred_fallthru
          _
      $region60: #{tpu_custom_call.1} parent=5 // pred_fallthru
        _
    $region6: #{tpu_custom_call.1} parent=1 // loop_footer
      %s19 = sadd.s32 1, %s15
    $region7: #{tpu_custom_call.1} parent=1 // loop_footer_branch
      %14 = sbr.rel target = $region3
    $region8: #{tpu_custom_call.1} parent=1 // loop_exit
      _
    %1320 = vsyncpa [#allocation6], 1
    %s1321 = scalar_lea.sflag [#allocation6], 1
    %1322 = vsyncpa %s1321, 1

</llo_original>
